<compile_context>
chip_gen: v7x
topology: tpu7x:2x2x1
jax: 0.10.0
libtpu: 0.0.40
codegen_flags: <defaults>
</compile_context>

<pallas_src>
import math

import jax
import jax.numpy as jnp
from jax.experimental import pallas as pl
from jax.experimental.pallas import tpu as pltpu


def _layernorm_f32(v, g, b, eps=1e-5):
    v = v.astype(jnp.float32)
    mu = jnp.mean(v, axis=-1, keepdims=True)
    var = jnp.mean(jnp.square(v - mu), axis=-1, keepdims=True)
    return (v - mu) * jax.lax.rsqrt(var + eps) * g + b


def _vmem_limit_bytes():
    # Size the scoped-VMEM limit from the chip (v5e/v6e: 128 MiB, v7x: 64 MiB/TC),
    # with a conservative fallback if the query is unavailable.
    try:
        cap = int(pltpu.get_tpu_info().vmem_capacity_bytes)
    except Exception:
        cap = 64 << 20
    return int(min(100 << 20, (cap * 7) // 8))


def _pick_batch_tile(B, target):
    """Largest divisor of B that is <= target, keeping >=2 batch steps when B >= 2."""
    target = max(1, min(target, B))
    if B >= 2:
        target = min(target, (B + 1) // 2)   # keep the 'parallel' axis >= 2 (v7x megacore)
    for tb in range(target, 0, -1):
        if B % tb == 0:
            return tb
    return 1


def _pick_head_group(head, dim_head, target_lanes=256):
    """Heads per group so the grouped projection width ~ MXU width (and divides head)."""
    g = max(1, min(head, max(1, target_lanes // dim_head)))
    while head % g != 0:
        g -= 1
    return g


def perceiver_attention_ca(x, latents, params, *, dim_head, tb=64):
    b, t, aa, dim = x.shape
    hw = latents.shape[2]
    dim_hidden = params["wq_t"].shape[1]
    head = dim_hidden // dim_head
    B = b * t

    TB = _pick_batch_tile(B, tb)
    G = _pick_head_group(head, dim_head)       # heads per group
    NG = head // G                             # number of head groups (inner grid axis)
    GDH = G * dim_head                         # grouped projection width

    x2 = x.reshape(B, aa, dim)
    lat2 = latents.reshape(B, hw, dim)

    # ---- parameter prep (outside the kernel, runs once) -----------------------
    # Fold the full attention scale into the q projection:
    # softmax((q*s)@(k*s).T) == softmax((q*s^2)@k.T) with s^2 = 1/sqrt(dim_head).
    scale2 = jnp.float32(1.0 / math.sqrt(dim_head))
    wq_t = params["wq_t"].astype(jnp.float32) * scale2          # (dim, dim_hidden)
    wk_t = params["wkv_t"][:, :dim_hidden]
    wv_t = params["wkv_t"][:, dim_hidden:]
    # Group heads along the hidden axis (hidden col = h*dim_head + d) -> bf16 blocks.
    wq_g = wq_t.reshape(dim, NG, GDH).transpose(1, 0, 2).astype(jnp.bfloat16)   # (NG, dim, GDH)
    wk_g = wk_t.reshape(dim, NG, GDH).transpose(1, 0, 2).astype(jnp.bfloat16)
    wv_g = wv_t.reshape(dim, NG, GDH).transpose(1, 0, 2).astype(jnp.bfloat16)
    wout_g = params["wout_t"].reshape(NG, GDH, dim).astype(jnp.bfloat16)        # (NG, GDH, dim)

    g1 = params["g1"].astype(jnp.float32).reshape(1, dim)
    b1 = params["b1"].astype(jnp.float32).reshape(1, dim)
    g2 = params["g2"].astype(jnp.float32).reshape(1, dim)
    b2 = params["b2"].astype(jnp.float32).reshape(1, dim)

    def kernel(x_ref, lat_ref, g1_ref, b1_ref, g2_ref, b2_ref,
               wq_ref, wk_ref, wv_ref, wout_ref, out_ref,
               xn_ref, ln_ref, acc_ref):
        gi = pl.program_id(1)   # head-group index (inner, "arbitrary" reduction axis)

        # Hoisted LayerNorms + accumulator init: once per batch tile (group 0 only).
        @pl.when(gi == 0)
        def _init():
            xn = _layernorm_f32(x_ref[...], g1_ref[...], b1_ref[...])
            ln = _layernorm_f32(lat_ref[...], g2_ref[...], b2_ref[...])
            xn_ref[...] = xn.reshape(TB * aa, dim).astype(jnp.bfloat16)
            ln_ref[...] = ln.reshape(TB * hw, dim).astype(jnp.bfloat16)
            acc_ref[...] = jnp.zeros_like(acc_ref)

        xn2 = xn_ref[...]                                   # (TB*aa, dim) bf16
        ln2 = ln_ref[...]                                   # (TB*hw, dim) bf16

        # Grouped projections: wide-N (GDH) bf16 matmuls, f32 accumulate on the MXU.
        qg = jnp.dot(ln2, wq_ref[0], preferred_element_type=jnp.float32).astype(jnp.bfloat16)
        kg = jnp.dot(xn2, wk_ref[0], preferred_element_type=jnp.float32).astype(jnp.bfloat16)
        vg = jnp.dot(xn2, wv_ref[0], preferred_element_type=jnp.float32).astype(jnp.bfloat16)

        q3 = qg.reshape(TB, hw, GDH)
        k3 = kg.reshape(TB, aa, GDH)
        v3 = vg.reshape(TB, aa, GDH)

        # Per-head attention inside the group (G is small; static unroll is bounded).
        parts = []
        for h in range(G):
            lo, hi = h * dim_head, (h + 1) * dim_head
            qh = q3[:, :, lo:hi]
            kh = k3[:, :, lo:hi]
            vh = v3[:, :, lo:hi]
            s = jnp.einsum('bqd,bkd->bqk', qh, kh,
                           preferred_element_type=jnp.float32)          # (TB, hw, aa) f32
            s = s - jnp.max(s, axis=-1, keepdims=True)
            e = jnp.exp(s)
            p = e * pl.reciprocal(jnp.sum(e, axis=-1, keepdims=True), approx=True)
            oh = jnp.einsum('bqk,bkd->bqd', p.astype(jnp.bfloat16), vh,
                            preferred_element_type=jnp.float32)          # (TB, hw, dh)
            parts.append(oh.astype(jnp.bfloat16))

        og = jnp.concatenate(parts, axis=-1) if G > 1 else parts[0]      # (TB, hw, GDH)
        og2 = og.reshape(TB * hw, GDH)

        # Head-group merge folded into the output projection; accumulate in f32 scratch.
        acc_ref[...] += jnp.dot(og2, wout_ref[0], preferred_element_type=jnp.float32)

        @pl.when(gi == NG - 1)
        def _finalize():
            out_ref[...] = acc_ref[...].reshape(TB, hw, dim).astype(out_ref.dtype)

    grid = (B // TB, NG)

    out = pl.pallas_call(
        kernel,
        grid=grid,
        in_specs=[
            pl.BlockSpec((TB, aa, dim), lambda i, g: (i, 0, 0)),        # x tile (constant over g)
            pl.BlockSpec((TB, hw, dim), lambda i, g: (i, 0, 0)),        # latents tile
            pl.BlockSpec((1, dim), lambda i, g: (0, 0)),                # norm1 gamma
            pl.BlockSpec((1, dim), lambda i, g: (0, 0)),                # norm1 beta
            pl.BlockSpec((1, dim), lambda i, g: (0, 0)),                # norm2 gamma
            pl.BlockSpec((1, dim), lambda i, g: (0, 0)),                # norm2 beta
            pl.BlockSpec((1, dim, GDH), lambda i, g: (g, 0, 0)),        # wq  (streamed per group)
            pl.BlockSpec((1, dim, GDH), lambda i, g: (g, 0, 0)),        # wk
            pl.BlockSpec((1, dim, GDH), lambda i, g: (g, 0, 0)),        # wv
            pl.BlockSpec((1, GDH, dim), lambda i, g: (g, 0, 0)),        # wout
        ],
        out_specs=pl.BlockSpec((TB, hw, dim), lambda i, g: (i, 0, 0)),
        out_shape=jax.ShapeDtypeStruct((B, hw, dim), x.dtype),
        scratch_shapes=[
            pltpu.VMEM((TB * aa, dim), jnp.bfloat16),    # hoisted LayerNorm(x)
            pltpu.VMEM((TB * hw, dim), jnp.bfloat16),    # hoisted LayerNorm(latents)
            pltpu.VMEM((TB * hw, dim), jnp.float32),     # f32 output accumulator
        ],
        compiler_params=pltpu.CompilerParams(
            dimension_semantics=("parallel", "arbitrary"),
            vmem_limit_bytes=_vmem_limit_bytes(),
        ),
    )(x2, lat2, g1, b1, g2, b2, wq_g, wk_g, wv_g, wout_g)

    return out.reshape(b, t, hw, dim)


def reference(x, latents, params, *, dim_head):
    """Pure-JAX (f32) mirror of the PyTorch forward, for correctness check."""
    b, t, aa, dim = x.shape
    hw = latents.shape[2]
    dim_hidden = params["wq_t"].shape[1]
    head = dim_hidden // dim_head
    B = b * t

    x2 = x.reshape(B, aa, dim)
    lat2 = latents.reshape(B, hw, dim)
    xn = _layernorm_f32(x2, params["g1"], params["b1"])
    ln = _layernorm_f32(lat2, params["g2"], params["b2"])

    q = ln @ params["wq_t"]
    kv = xn @ params["wkv_t"]
    k, v = kv[..., :dim_hidden], kv[..., dim_hidden:]

    q = q.reshape(B, hw, head, dim_head).transpose(0, 2, 1, 3)
    k = k.reshape(B, aa, head, dim_head).transpose(0, 2, 1, 3)
    v = v.reshape(B, aa, head, dim_head).transpose(0, 2, 1, 3)

    scale = 1.0 / math.sqrt(math.sqrt(dim_head))
    w = jnp.einsum('bhqd,bhkd->bhqk', q * scale, k * scale)
    w = jax.nn.softmax(w.astype(jnp.float32), axis=-1)
    o = jnp.einsum('bhqk,bhkd->bhqd', w, v)
    o = o.transpose(0, 2, 1, 3).reshape(B, hw, dim_hidden)
    o = o @ params["wout_t"]
    return o.reshape(b, t, hw, dim)


if __name__ == "__main__":
    # Small-shape configuration consistent with the module (dim_hidden % dim_head == 0).
    b, t, aa, hw = 2, 2, 8, 16
    dim, dim_head, dim_hidden = 32, 8, 32   # head = 4

    key = jax.random.PRNGKey(0)
    ks = jax.random.split(key, 8)
    x = jax.random.normal(ks[0], (b, t, aa, dim), jnp.float32)
    latents = jax.random.normal(ks[1], (b, t, hw, dim), jnp.float32)

    params = dict(
        g1=jnp.ones((1, dim), jnp.float32) + 0.1 * jax.random.normal(ks[2], (1, dim), jnp.float32),
        b1=0.1 * jax.random.normal(ks[3], (1, dim), jnp.float32),
        g2=jnp.ones((1, dim), jnp.float32),
        b2=jnp.zeros((1, dim), jnp.float32),
        wq_t=0.1 * jax.random.normal(ks[4], (dim, dim_hidden), jnp.float32),
        wkv_t=0.1 * jax.random.normal(ks[5], (dim, 2 * dim_hidden), jnp.float32),
        # NOTE: the PyTorch module zero-inits to_out.weight (output would be all zeros);
        # random values here so the kernel compute path is actually exercised.
        wout_t=0.1 * jax.random.normal(ks[6], (dim_hidden, dim), jnp.float32),
    )

    out = perceiver_attention_ca(x, latents, params, dim_head=dim_head)
    jax.block_until_ready(out)

    ref = reference(x, latents, params, dim_head=dim_head)
    max_err = float(jnp.max(jnp.abs(out - ref)))
    assert out.shape == (b, t, hw, dim), out.shape
    # bf16 matmul operands + approx reciprocal -> expect ~1e-2-level agreement vs f32 ref.
    assert max_err < 5e-2, f"max abs error {max_err}"
    print("KERNEL_OK")
</pallas_src>

<mosaic_0001>
module attributes {stable_mosaic.version = 11 : i64} {
  func.func @kernel(%arg0: i32, %arg1: i32, %arg2: memref<2x8x32xf32, #tpu.memory_space<vmem>>, %arg3: memref<2x16x32xf32, #tpu.memory_space<vmem>>, %arg4: memref<1x32xf32, #tpu.memory_space<vmem>>, %arg5: memref<1x32xf32, #tpu.memory_space<vmem>>, %arg6: memref<1x32xf32, #tpu.memory_space<vmem>>, %arg7: memref<1x32xf32, #tpu.memory_space<vmem>>, %arg8: memref<1x32x32xbf16, #tpu.memory_space<vmem>>, %arg9: memref<1x32x32xbf16, #tpu.memory_space<vmem>>, %arg10: memref<1x32x32xbf16, #tpu.memory_space<vmem>>, %arg11: memref<1x32x32xbf16, #tpu.memory_space<vmem>>, %arg12: memref<2x16x32xf32, #tpu.memory_space<vmem>>, %arg13: memref<16x32xbf16, #tpu.memory_space<vmem>>, %arg14: memref<32x32xbf16, #tpu.memory_space<vmem>>, %arg15: memref<32x32xf32, #tpu.memory_space<vmem>>) attributes {dimension_semantics = [#tpu.dimension_semantics<parallel>, #tpu.dimension_semantics<arbitrary>], iteration_bounds = array<i64: 2, 1>, scalar_prefetch = 0 : i64, scratch_operands = 3 : i64, tpu.core_type = #tpu.core_type<tc>, window_params = [{transform_indices = @transform_0, window_bounds = array<i64: 2, 8, 32>}, {transform_indices = @transform_1, window_bounds = array<i64: 2, 16, 32>}, {pipeline_mode = #tpu.pipeline_mode<synchronous>, transform_indices = @transform_2, window_bounds = array<i64: 1, 32>}, {pipeline_mode = #tpu.pipeline_mode<synchronous>, transform_indices = @transform_3, window_bounds = array<i64: 1, 32>}, {pipeline_mode = #tpu.pipeline_mode<synchronous>, transform_indices = @transform_4, window_bounds = array<i64: 1, 32>}, {pipeline_mode = #tpu.pipeline_mode<synchronous>, transform_indices = @transform_5, window_bounds = array<i64: 1, 32>}, {transform_indices = @transform_6, window_bounds = array<i64: 1, 32, 32>}, {transform_indices = @transform_7, window_bounds = array<i64: 1, 32, 32>}, {transform_indices = @transform_8, window_bounds = array<i64: 1, 32, 32>}, {transform_indices = @transform_9, window_bounds = array<i64: 1, 32, 32>}, {transform_indices = @transform_10, window_bounds = array<i64: 2, 16, 32>}]} {
    %c0_i32 = arith.constant 0 : i32
    %0 = arith.cmpi eq, %arg1, %c0_i32 : i32
    %1 = arith.extui %0 : i1 to i32
    %c0_i32_0 = arith.constant 0 : i32
    %2 = arith.cmpi ne, %1, %c0_i32_0 : i32
    scf.if %2 {
      %c0_41 = arith.constant 0 : index
      %c0_42 = arith.constant 0 : index
      %c0_43 = arith.constant 0 : index
      %99 = vector.load %arg2[%c0_41, %c0_42, %c0_43] : memref<2x8x32xf32, #tpu.memory_space<vmem>>, vector<2x8x32xf32>
      %c0_44 = arith.constant 0 : index
      %c0_45 = arith.constant 0 : index
      %100 = vector.load %arg4[%c0_44, %c0_45] : memref<1x32xf32, #tpu.memory_space<vmem>>, vector<1x32xf32>
      %c0_46 = arith.constant 0 : index
      %c0_47 = arith.constant 0 : index
      %101 = vector.load %arg5[%c0_46, %c0_47] : memref<1x32xf32, #tpu.memory_space<vmem>>, vector<1x32xf32>
      %cst_48 = arith.constant dense<0.000000e+00> : vector<2x8xf32>
      %102 = vector.multi_reduction <add>, %99, %cst_48 [2] : vector<2x8x32xf32> to vector<2x8xf32>
      %103 = vector.shape_cast %102 : vector<2x8xf32> to vector<2x8x1xf32>
      %cst_49 = arith.constant 3.200000e+01 : f32
      %104 = vector.broadcast %cst_49 : f32 to vector<2x8x1xf32>
      %105 = arith.divf %103, %104 : vector<2x8x1xf32>
      %106 = vector.broadcast %105 : vector<2x8x1xf32> to vector<2x8x32xf32>
      %107 = arith.subf %99, %106 : vector<2x8x32xf32>
      %108 = arith.mulf %107, %107 : vector<2x8x32xf32>
      %cst_50 = arith.constant dense<0.000000e+00> : vector<2x8xf32>
      %109 = vector.multi_reduction <add>, %108, %cst_50 [2] : vector<2x8x32xf32> to vector<2x8xf32>
      %110 = vector.shape_cast %109 : vector<2x8xf32> to vector<2x8x1xf32>
      %cst_51 = arith.constant 3.200000e+01 : f32
      %111 = vector.broadcast %cst_51 : f32 to vector<2x8x1xf32>
      %112 = arith.divf %110, %111 : vector<2x8x1xf32>
      %113 = vector.broadcast %105 : vector<2x8x1xf32> to vector<2x8x32xf32>
      %114 = arith.subf %99, %113 : vector<2x8x32xf32>
      %cst_52 = arith.constant 9.99999974E-6 : f32
      %115 = vector.broadcast %cst_52 : f32 to vector<2x8x1xf32>
      %116 = arith.addf %112, %115 : vector<2x8x1xf32>
      %117 = math.rsqrt %116 : vector<2x8x1xf32>
      %118 = vector.broadcast %117 : vector<2x8x1xf32> to vector<2x8x32xf32>
      %119 = arith.mulf %114, %118 : vector<2x8x32xf32>
      %120 = vector.shape_cast %100 : vector<1x32xf32> to vector<1x1x32xf32>
      %121 = vector.broadcast %120 : vector<1x1x32xf32> to vector<2x8x32xf32>
      %122 = arith.mulf %119, %121 : vector<2x8x32xf32>
      %123 = vector.shape_cast %101 : vector<1x32xf32> to vector<1x1x32xf32>
      %124 = vector.broadcast %123 : vector<1x1x32xf32> to vector<2x8x32xf32>
      %125 = arith.addf %122, %124 : vector<2x8x32xf32>
      %c0_53 = arith.constant 0 : index
      %c0_54 = arith.constant 0 : index
      %c0_55 = arith.constant 0 : index
      %126 = vector.load %arg3[%c0_53, %c0_54, %c0_55] : memref<2x16x32xf32, #tpu.memory_space<vmem>>, vector<2x16x32xf32>
      %c0_56 = arith.constant 0 : index
      %c0_57 = arith.constant 0 : index
      %127 = vector.load %arg6[%c0_56, %c0_57] : memref<1x32xf32, #tpu.memory_space<vmem>>, vector<1x32xf32>
      %c0_58 = arith.constant 0 : index
      %c0_59 = arith.constant 0 : index
      %128 = vector.load %arg7[%c0_58, %c0_59] : memref<1x32xf32, #tpu.memory_space<vmem>>, vector<1x32xf32>
      %cst_60 = arith.constant dense<0.000000e+00> : vector<2x16xf32>
      %129 = vector.multi_reduction <add>, %126, %cst_60 [2] : vector<2x16x32xf32> to vector<2x16xf32>
      %130 = vector.shape_cast %129 : vector<2x16xf32> to vector<2x16x1xf32>
      %cst_61 = arith.constant 3.200000e+01 : f32
      %131 = vector.broadcast %cst_61 : f32 to vector<2x16x1xf32>
      %132 = arith.divf %130, %131 : vector<2x16x1xf32>
      %133 = vector.broadcast %132 : vector<2x16x1xf32> to vector<2x16x32xf32>
      %134 = arith.subf %126, %133 : vector<2x16x32xf32>
      %135 = arith.mulf %134, %134 : vector<2x16x32xf32>
      %cst_62 = arith.constant dense<0.000000e+00> : vector<2x16xf32>
      %136 = vector.multi_reduction <add>, %135, %cst_62 [2] : vector<2x16x32xf32> to vector<2x16xf32>
      %137 = vector.shape_cast %136 : vector<2x16xf32> to vector<2x16x1xf32>
      %cst_63 = arith.constant 3.200000e+01 : f32
      %138 = vector.broadcast %cst_63 : f32 to vector<2x16x1xf32>
      %139 = arith.divf %137, %138 : vector<2x16x1xf32>
      %140 = vector.broadcast %132 : vector<2x16x1xf32> to vector<2x16x32xf32>
      %141 = arith.subf %126, %140 : vector<2x16x32xf32>
      %cst_64 = arith.constant 9.99999974E-6 : f32
      %142 = vector.broadcast %cst_64 : f32 to vector<2x16x1xf32>
      %143 = arith.addf %139, %142 : vector<2x16x1xf32>
      %144 = math.rsqrt %143 : vector<2x16x1xf32>
      %145 = vector.broadcast %144 : vector<2x16x1xf32> to vector<2x16x32xf32>
      %146 = arith.mulf %141, %145 : vector<2x16x32xf32>
      %147 = vector.shape_cast %127 : vector<1x32xf32> to vector<1x1x32xf32>
      %148 = vector.broadcast %147 : vector<1x1x32xf32> to vector<2x16x32xf32>
      %149 = arith.mulf %146, %148 : vector<2x16x32xf32>
      %150 = vector.shape_cast %128 : vector<1x32xf32> to vector<1x1x32xf32>
      %151 = vector.broadcast %150 : vector<1x1x32xf32> to vector<2x16x32xf32>
      %152 = arith.addf %149, %151 : vector<2x16x32xf32>
      %153 = vector.shape_cast %125 : vector<2x8x32xf32> to vector<16x32xf32>
      %154 = arith.truncf %153 : vector<16x32xf32> to vector<16x32xbf16>
      %c0_65 = arith.constant 0 : index
      %c0_66 = arith.constant 0 : index
      %155 = vector.load %arg13[%c0_65, %c0_66] : memref<16x32xbf16, #tpu.memory_space<vmem>>, vector<16x32xbf16>
      tpu.vector_store %arg13[%c0_65, %c0_66], %154 {strides = array<i32>} : memref<16x32xbf16, #tpu.memory_space<vmem>>, vector<16x32xbf16>,
      %156 = vector.shape_cast %152 : vector<2x16x32xf32> to vector<32x32xf32>
      %157 = arith.truncf %156 : vector<32x32xf32> to vector<32x32xbf16>
      %c0_67 = arith.constant 0 : index
      %c0_68 = arith.constant 0 : index
      %158 = vector.load %arg14[%c0_67, %c0_68] : memref<32x32xbf16, #tpu.memory_space<vmem>>, vector<32x32xbf16>
      tpu.vector_store %arg14[%c0_67, %c0_68], %157 {strides = array<i32>} : memref<32x32xbf16, #tpu.memory_space<vmem>>, vector<32x32xbf16>,
      %cst_69 = arith.constant 0.000000e+00 : f32
      %159 = vector.broadcast %cst_69 : f32 to vector<32x32xf32>
      %c0_70 = arith.constant 0 : index
      %c0_71 = arith.constant 0 : index
      %160 = vector.load %arg15[%c0_70, %c0_71] : memref<32x32xf32, #tpu.memory_space<vmem>>, vector<32x32xf32>
      tpu.vector_store %arg15[%c0_70, %c0_71], %159 {strides = array<i32>} : memref<32x32xf32, #tpu.memory_space<vmem>>, vector<32x32xf32>,
    } else {
    }
    %c0 = arith.constant 0 : index
    %c0_1 = arith.constant 0 : index
    %3 = vector.load %arg13[%c0, %c0_1] : memref<16x32xbf16, #tpu.memory_space<vmem>>, vector<16x32xbf16>
    %c0_2 = arith.constant 0 : index
    %c0_3 = arith.constant 0 : index
    %4 = vector.load %arg14[%c0_2, %c0_3] : memref<32x32xbf16, #tpu.memory_space<vmem>>, vector<32x32xbf16>
    %c0_4 = arith.constant 0 : index
    %c0_5 = arith.constant 0 : index
    %c0_6 = arith.constant 0 : index
    %5 = vector.load %arg8[%c0_4, %c0_5, %c0_6] : memref<1x32x32xbf16, #tpu.memory_space<vmem>>, vector<1x32x32xbf16>
    %6 = vector.shape_cast %5 : vector<1x32x32xbf16> to vector<32x32xbf16>
    %cst = arith.constant dense<0.000000e+00> : vector<32x32xf32>
    %7 = tpu.matmul %4, %6, %cst {dimension_numbers = #tpu.dot_dimension_numbers<[1], [0], [0], [1], [0, 0, 1, 1], [], []>} : vector<32x32xbf16>, vector<32x32xbf16>, vector<32x32xf32> -> vector<32x32xf32>
    %8 = arith.truncf %7 : vector<32x32xf32> to vector<32x32xbf16>
    %c0_7 = arith.constant 0 : index
    %c0_8 = arith.constant 0 : index
    %c0_9 = arith.constant 0 : index
    %9 = vector.load %arg9[%c0_7, %c0_8, %c0_9] : memref<1x32x32xbf16, #tpu.memory_space<vmem>>, vector<1x32x32xbf16>
    %10 = vector.shape_cast %9 : vector<1x32x32xbf16> to vector<32x32xbf16>
    %cst_10 = arith.constant dense<0.000000e+00> : vector<16x32xf32>
    %11 = tpu.matmul %3, %10, %cst_10 {dimension_numbers = #tpu.dot_dimension_numbers<[1], [0], [0], [1], [0, 0, 1, 1], [], []>} : vector<16x32xbf16>, vector<32x32xbf16>, vector<16x32xf32> -> vector<16x32xf32>
    %12 = arith.truncf %11 : vector<16x32xf32> to vector<16x32xbf16>
    %c0_11 = arith.constant 0 : index
    %c0_12 = arith.constant 0 : index
    %c0_13 = arith.constant 0 : index
    %13 = vector.load %arg10[%c0_11, %c0_12, %c0_13] : memref<1x32x32xbf16, #tpu.memory_space<vmem>>, vector<1x32x32xbf16>
    %14 = vector.shape_cast %13 : vector<1x32x32xbf16> to vector<32x32xbf16>
    %cst_14 = arith.constant dense<0.000000e+00> : vector<16x32xf32>
    %15 = tpu.matmul %3, %14, %cst_14 {dimension_numbers = #tpu.dot_dimension_numbers<[1], [0], [0], [1], [0, 0, 1, 1], [], []>} : vector<16x32xbf16>, vector<32x32xbf16>, vector<16x32xf32> -> vector<16x32xf32>
    %16 = arith.truncf %15 : vector<16x32xf32> to vector<16x32xbf16>
    %17 = vector.shape_cast %8 : vector<32x32xbf16> to vector<2x16x32xbf16>
    %18 = vector.shape_cast %12 : vector<16x32xbf16> to vector<2x8x32xbf16>
    %19 = vector.shape_cast %16 : vector<16x32xbf16> to vector<2x8x32xbf16>
    %20 = vector.extract_strided_slice %17 {offsets = [0, 0, 0], sizes = [2, 16, 8], strides = [1, 1, 1]} : vector<2x16x32xbf16> to vector<2x16x8xbf16>
    %21 = vector.extract_strided_slice %18 {offsets = [0, 0, 0], sizes = [2, 8, 8], strides = [1, 1, 1]} : vector<2x8x32xbf16> to vector<2x8x8xbf16>
    %22 = vector.extract_strided_slice %19 {offsets = [0, 0, 0], sizes = [2, 8, 8], strides = [1, 1, 1]} : vector<2x8x32xbf16> to vector<2x8x8xbf16>
    "tpu.trace_start"() <{level = 10 : i32, message = "bqd,bkd->bqk"}> : () -> ()
    %cst_15 = arith.constant dense<0.000000e+00> : vector<2x16x8xf32>
    %23 = tpu.matmul %20, %21, %cst_15 {dimension_numbers = #tpu.dot_dimension_numbers<[2], [2], [1], [1], [0, 0, 0, 1, 1, 1], [0], [0]>} : vector<2x16x8xbf16>, vector<2x8x8xbf16>, vector<2x16x8xf32> -> vector<2x16x8xf32>
    "tpu.trace_stop"() : () -> ()
    %cst_16 = arith.constant dense<0xFF800000> : vector<2x16xf32>
    %24 = vector.multi_reduction <maximumf>, %23, %cst_16 [2] : vector<2x16x8xf32> to vector<2x16xf32>
    %25 = vector.shape_cast %24 : vector<2x16xf32> to vector<2x16x1xf32>
    %26 = vector.broadcast %25 : vector<2x16x1xf32> to vector<2x16x8xf32>
    %27 = arith.subf %23, %26 : vector<2x16x8xf32>
    %28 = math.exp %27 : vector<2x16x8xf32>
    %cst_17 = arith.constant dense<0.000000e+00> : vector<2x16xf32>
    %29 = vector.multi_reduction <add>, %28, %cst_17 [2] : vector<2x16x8xf32> to vector<2x16xf32>
    %30 = vector.shape_cast %29 : vector<2x16xf32> to vector<2x16x1xf32>
    %31 = tpu.reciprocal %30 {approx = true} : vector<2x16x1xf32> -> vector<2x16x1xf32>
    %32 = vector.broadcast %31 : vector<2x16x1xf32> to vector<2x16x8xf32>
    %33 = arith.mulf %28, %32 : vector<2x16x8xf32>
    %34 = arith.truncf %33 : vector<2x16x8xf32> to vector<2x16x8xbf16>
    "tpu.trace_start"() <{level = 10 : i32, message = "bqk,bkd->bqd"}> : () -> ()
    %cst_18 = arith.constant dense<0.000000e+00> : vector<2x16x8xf32>
    %35 = tpu.matmul %34, %22, %cst_18 {dimension_numbers = #tpu.dot_dimension_numbers<[2], [1], [1], [2], [0, 0, 0, 1, 1, 2], [0], [0]>} : vector<2x16x8xbf16>, vector<2x8x8xbf16>, vector<2x16x8xf32> -> vector<2x16x8xf32>
    "tpu.trace_stop"() : () -> ()
    %36 = arith.truncf %35 : vector<2x16x8xf32> to vector<2x16x8xbf16>
    %37 = vector.extract_strided_slice %17 {offsets = [0, 0, 8], sizes = [2, 16, 8], strides = [1, 1, 1]} : vector<2x16x32xbf16> to vector<2x16x8xbf16>
    %38 = vector.extract_strided_slice %18 {offsets = [0, 0, 8], sizes = [2, 8, 8], strides = [1, 1, 1]} : vector<2x8x32xbf16> to vector<2x8x8xbf16>
    %39 = vector.extract_strided_slice %19 {offsets = [0, 0, 8], sizes = [2, 8, 8], strides = [1, 1, 1]} : vector<2x8x32xbf16> to vector<2x8x8xbf16>
    "tpu.trace_start"() <{level = 10 : i32, message = "bqd,bkd->bqk"}> : () -> ()
    %cst_19 = arith.constant dense<0.000000e+00> : vector<2x16x8xf32>
    %40 = tpu.matmul %37, %38, %cst_19 {dimension_numbers = #tpu.dot_dimension_numbers<[2], [2], [1], [1], [0, 0, 0, 1, 1, 1], [0], [0]>} : vector<2x16x8xbf16>, vector<2x8x8xbf16>, vector<2x16x8xf32> -> vector<2x16x8xf32>
    "tpu.trace_stop"() : () -> ()
    %cst_20 = arith.constant dense<0xFF800000> : vector<2x16xf32>
    %41 = vector.multi_reduction <maximumf>, %40, %cst_20 [2] : vector<2x16x8xf32> to vector<2x16xf32>
    %42 = vector.shape_cast %41 : vector<2x16xf32> to vector<2x16x1xf32>
    %43 = vector.broadcast %42 : vector<2x16x1xf32> to vector<2x16x8xf32>
    %44 = arith.subf %40, %43 : vector<2x16x8xf32>
    %45 = math.exp %44 : vector<2x16x8xf32>
    %cst_21 = arith.constant dense<0.000000e+00> : vector<2x16xf32>
    %46 = vector.multi_reduction <add>, %45, %cst_21 [2] : vector<2x16x8xf32> to vector<2x16xf32>
    %47 = vector.shape_cast %46 : vector<2x16xf32> to vector<2x16x1xf32>
    %48 = tpu.reciprocal %47 {approx = true} : vector<2x16x1xf32> -> vector<2x16x1xf32>
    %49 = vector.broadcast %48 : vector<2x16x1xf32> to vector<2x16x8xf32>
    %50 = arith.mulf %45, %49 : vector<2x16x8xf32>
    %51 = arith.truncf %50 : vector<2x16x8xf32> to vector<2x16x8xbf16>
    "tpu.trace_start"() <{level = 10 : i32, message = "bqk,bkd->bqd"}> : () -> ()
    %cst_22 = arith.constant dense<0.000000e+00> : vector<2x16x8xf32>
    %52 = tpu.matmul %51, %39, %cst_22 {dimension_numbers = #tpu.dot_dimension_numbers<[2], [1], [1], [2], [0, 0, 0, 1, 1, 2], [0], [0]>} : vector<2x16x8xbf16>, vector<2x8x8xbf16>, vector<2x16x8xf32> -> vector<2x16x8xf32>
    "tpu.trace_stop"() : () -> ()
    %53 = arith.truncf %52 : vector<2x16x8xf32> to vector<2x16x8xbf16>
    %54 = vector.extract_strided_slice %17 {offsets = [0, 0, 16], sizes = [2, 16, 8], strides = [1, 1, 1]} : vector<2x16x32xbf16> to vector<2x16x8xbf16>
    %55 = vector.extract_strided_slice %18 {offsets = [0, 0, 16], sizes = [2, 8, 8], strides = [1, 1, 1]} : vector<2x8x32xbf16> to vector<2x8x8xbf16>
    %56 = vector.extract_strided_slice %19 {offsets = [0, 0, 16], sizes = [2, 8, 8], strides = [1, 1, 1]} : vector<2x8x32xbf16> to vector<2x8x8xbf16>
    "tpu.trace_start"() <{level = 10 : i32, message = "bqd,bkd->bqk"}> : () -> ()
    %cst_23 = arith.constant dense<0.000000e+00> : vector<2x16x8xf32>
    %57 = tpu.matmul %54, %55, %cst_23 {dimension_numbers = #tpu.dot_dimension_numbers<[2], [2], [1], [1], [0, 0, 0, 1, 1, 1], [0], [0]>} : vector<2x16x8xbf16>, vector<2x8x8xbf16>, vector<2x16x8xf32> -> vector<2x16x8xf32>
    "tpu.trace_stop"() : () -> ()
    %cst_24 = arith.constant dense<0xFF800000> : vector<2x16xf32>
    %58 = vector.multi_reduction <maximumf>, %57, %cst_24 [2] : vector<2x16x8xf32> to vector<2x16xf32>
    %59 = vector.shape_cast %58 : vector<2x16xf32> to vector<2x16x1xf32>
    %60 = vector.broadcast %59 : vector<2x16x1xf32> to vector<2x16x8xf32>
    %61 = arith.subf %57, %60 : vector<2x16x8xf32>
    %62 = math.exp %61 : vector<2x16x8xf32>
    %cst_25 = arith.constant dense<0.000000e+00> : vector<2x16xf32>
    %63 = vector.multi_reduction <add>, %62, %cst_25 [2] : vector<2x16x8xf32> to vector<2x16xf32>
    %64 = vector.shape_cast %63 : vector<2x16xf32> to vector<2x16x1xf32>
    %65 = tpu.reciprocal %64 {approx = true} : vector<2x16x1xf32> -> vector<2x16x1xf32>
    %66 = vector.broadcast %65 : vector<2x16x1xf32> to vector<2x16x8xf32>
    %67 = arith.mulf %62, %66 : vector<2x16x8xf32>
    %68 = arith.truncf %67 : vector<2x16x8xf32> to vector<2x16x8xbf16>
    "tpu.trace_start"() <{level = 10 : i32, message = "bqk,bkd->bqd"}> : () -> ()
    %cst_26 = arith.constant dense<0.000000e+00> : vector<2x16x8xf32>
    %69 = tpu.matmul %68, %56, %cst_26 {dimension_numbers = #tpu.dot_dimension_numbers<[2], [1], [1], [2], [0, 0, 0, 1, 1, 2], [0], [0]>} : vector<2x16x8xbf16>, vector<2x8x8xbf16>, vector<2x16x8xf32> -> vector<2x16x8xf32>
    "tpu.trace_stop"() : () -> ()
    %70 = arith.truncf %69 : vector<2x16x8xf32> to vector<2x16x8xbf16>
    %71 = vector.extract_strided_slice %17 {offsets = [0, 0, 24], sizes = [2, 16, 8], strides = [1, 1, 1]} : vector<2x16x32xbf16> to vector<2x16x8xbf16>
    %72 = vector.extract_strided_slice %18 {offsets = [0, 0, 24], sizes = [2, 8, 8], strides = [1, 1, 1]} : vector<2x8x32xbf16> to vector<2x8x8xbf16>
    %73 = vector.extract_strided_slice %19 {offsets = [0, 0, 24], sizes = [2, 8, 8], strides = [1, 1, 1]} : vector<2x8x32xbf16> to vector<2x8x8xbf16>
    "tpu.trace_start"() <{level = 10 : i32, message = "bqd,bkd->bqk"}> : () -> ()
    %cst_27 = arith.constant dense<0.000000e+00> : vector<2x16x8xf32>
    %74 = tpu.matmul %71, %72, %cst_27 {dimension_numbers = #tpu.dot_dimension_numbers<[2], [2], [1], [1], [0, 0, 0, 1, 1, 1], [0], [0]>} : vector<2x16x8xbf16>, vector<2x8x8xbf16>, vector<2x16x8xf32> -> vector<2x16x8xf32>
    "tpu.trace_stop"() : () -> ()
    %cst_28 = arith.constant dense<0xFF800000> : vector<2x16xf32>
    %75 = vector.multi_reduction <maximumf>, %74, %cst_28 [2] : vector<2x16x8xf32> to vector<2x16xf32>
    %76 = vector.shape_cast %75 : vector<2x16xf32> to vector<2x16x1xf32>
    %77 = vector.broadcast %76 : vector<2x16x1xf32> to vector<2x16x8xf32>
    %78 = arith.subf %74, %77 : vector<2x16x8xf32>
    %79 = math.exp %78 : vector<2x16x8xf32>
    %cst_29 = arith.constant dense<0.000000e+00> : vector<2x16xf32>
    %80 = vector.multi_reduction <add>, %79, %cst_29 [2] : vector<2x16x8xf32> to vector<2x16xf32>
    %81 = vector.shape_cast %80 : vector<2x16xf32> to vector<2x16x1xf32>
    %82 = tpu.reciprocal %81 {approx = true} : vector<2x16x1xf32> -> vector<2x16x1xf32>
    %83 = vector.broadcast %82 : vector<2x16x1xf32> to vector<2x16x8xf32>
    %84 = arith.mulf %79, %83 : vector<2x16x8xf32>
    %85 = arith.truncf %84 : vector<2x16x8xf32> to vector<2x16x8xbf16>
    "tpu.trace_start"() <{level = 10 : i32, message = "bqk,bkd->bqd"}> : () -> ()
    %cst_30 = arith.constant dense<0.000000e+00> : vector<2x16x8xf32>
    %86 = tpu.matmul %85, %73, %cst_30 {dimension_numbers = #tpu.dot_dimension_numbers<[2], [1], [1], [2], [0, 0, 0, 1, 1, 2], [0], [0]>} : vector<2x16x8xbf16>, vector<2x8x8xbf16>, vector<2x16x8xf32> -> vector<2x16x8xf32>
    "tpu.trace_stop"() : () -> ()
    %87 = arith.truncf %86 : vector<2x16x8xf32> to vector<2x16x8xbf16>
    %88 = tpu.concatenate %36, %53, %70, %87 in 2 : vector<2x16x8xbf16>, vector<2x16x8xbf16>, vector<2x16x8xbf16>, vector<2x16x8xbf16> -> vector<2x16x32xbf16>
    %89 = vector.shape_cast %88 : vector<2x16x32xbf16> to vector<32x32xbf16>
    %c0_31 = arith.constant 0 : index
    %c0_32 = arith.constant 0 : index
    %90 = vector.load %arg15[%c0_31, %c0_32] : memref<32x32xf32, #tpu.memory_space<vmem>>, vector<32x32xf32>
    %c0_33 = arith.constant 0 : index
    %c0_34 = arith.constant 0 : index
    %c0_35 = arith.constant 0 : index
    %91 = vector.load %arg11[%c0_33, %c0_34, %c0_35] : memref<1x32x32xbf16, #tpu.memory_space<vmem>>, vector<1x32x32xbf16>
    %92 = vector.shape_cast %91 : vector<1x32x32xbf16> to vector<32x32xbf16>
    %cst_36 = arith.constant dense<0.000000e+00> : vector<32x32xf32>
    %93 = tpu.matmul %89, %92, %cst_36 {dimension_numbers = #tpu.dot_dimension_numbers<[1], [0], [0], [1], [0, 0, 1, 1], [], []>} : vector<32x32xbf16>, vector<32x32xbf16>, vector<32x32xf32> -> vector<32x32xf32>
    %94 = arith.addf %90, %93 : vector<32x32xf32>
    %c0_37 = arith.constant 0 : index
    %c0_38 = arith.constant 0 : index
    %95 = vector.load %arg15[%c0_37, %c0_38] : memref<32x32xf32, #tpu.memory_space<vmem>>, vector<32x32xf32>
    tpu.vector_store %arg15[%c0_37, %c0_38], %94 {strides = array<i32>} : memref<32x32xf32, #tpu.memory_space<vmem>>, vector<32x32xf32>,
    %c0_i32_39 = arith.constant 0 : i32
    %96 = arith.cmpi eq, %arg1, %c0_i32_39 : i32
    %97 = arith.extui %96 : i1 to i32
    %c0_i32_40 = arith.constant 0 : i32
    %98 = arith.cmpi ne, %97, %c0_i32_40 : i32
    scf.if %98 {
      %c0_41 = arith.constant 0 : index
      %c0_42 = arith.constant 0 : index
      %99 = vector.load %arg15[%c0_41, %c0_42] : memref<32x32xf32, #tpu.memory_space<vmem>>, vector<32x32xf32>
      %100 = vector.shape_cast %99 : vector<32x32xf32> to vector<2x16x32xf32>
      %c0_43 = arith.constant 0 : index
      %c0_44 = arith.constant 0 : index
      %c0_45 = arith.constant 0 : index
      %101 = vector.load %arg12[%c0_43, %c0_44, %c0_45] : memref<2x16x32xf32, #tpu.memory_space<vmem>>, vector<2x16x32xf32>
      tpu.vector_store %arg12[%c0_43, %c0_44, %c0_45], %100 {strides = array<i32>} : memref<2x16x32xf32, #tpu.memory_space<vmem>>, vector<2x16x32xf32>,
    } else {
    }
    return
  }
  func.func @transform_0(%arg0: i32, %arg1: i32) -> (i32, i32, i32) {
    %c0_i32 = arith.constant 0 : i32
    %c0_i32_0 = arith.constant 0 : i32
    %c0_i32_1 = arith.constant 0 : i32
    return %arg0, %c0_i32, %c0_i32_0 : i32, i32, i32
  }
  func.func @transform_1(%arg0: i32, %arg1: i32) -> (i32, i32, i32) {
    %c0_i32 = arith.constant 0 : i32
    %c0_i32_0 = arith.constant 0 : i32
    %c0_i32_1 = arith.constant 0 : i32
    return %arg0, %c0_i32, %c0_i32_0 : i32, i32, i32
  }
  func.func @transform_2(%arg0: i32, %arg1: i32) -> (i32, i32) {
    %c0_i32 = arith.constant 0 : i32
    %c0_i32_0 = arith.constant 0 : i32
    %c0_i32_1 = arith.constant 0 : i32
    return %c0_i32, %c0_i32_0 : i32, i32
  }
  func.func @transform_3(%arg0: i32, %arg1: i32) -> (i32, i32) {
    %c0_i32 = arith.constant 0 : i32
    %c0_i32_0 = arith.constant 0 : i32
    %c0_i32_1 = arith.constant 0 : i32
    return %c0_i32, %c0_i32_0 : i32, i32
  }
  func.func @transform_4(%arg0: i32, %arg1: i32) -> (i32, i32) {
    %c0_i32 = arith.constant 0 : i32
    %c0_i32_0 = arith.constant 0 : i32
    %c0_i32_1 = arith.constant 0 : i32
    return %c0_i32, %c0_i32_0 : i32, i32
  }
  func.func @transform_5(%arg0: i32, %arg1: i32) -> (i32, i32) {
    %c0_i32 = arith.constant 0 : i32
    %c0_i32_0 = arith.constant 0 : i32
    %c0_i32_1 = arith.constant 0 : i32
    return %c0_i32, %c0_i32_0 : i32, i32
  }
  func.func @transform_6(%arg0: i32, %arg1: i32) -> (i32, i32, i32) {
    %c0_i32 = arith.constant 0 : i32
    %c0_i32_0 = arith.constant 0 : i32
    %c0_i32_1 = arith.constant 0 : i32
    return %arg1, %c0_i32, %c0_i32_0 : i32, i32, i32
  }
  func.func @transform_7(%arg0: i32, %arg1: i32) -> (i32, i32, i32) {
    %c0_i32 = arith.constant 0 : i32
    %c0_i32_0 = arith.constant 0 : i32
    %c0_i32_1 = arith.constant 0 : i32
    return %arg1, %c0_i32, %c0_i32_0 : i32, i32, i32
  }
  func.func @transform_8(%arg0: i32, %arg1: i32) -> (i32, i32, i32) {
    %c0_i32 = arith.constant 0 : i32
    %c0_i32_0 = arith.constant 0 : i32
    %c0_i32_1 = arith.constant 0 : i32
    return %arg1, %c0_i32, %c0_i32_0 : i32, i32, i32
  }
  func.func @transform_9(%arg0: i32, %arg1: i32) -> (i32, i32, i32) {
    %c0_i32 = arith.constant 0 : i32
    %c0_i32_0 = arith.constant 0 : i32
    %c0_i32_1 = arith.constant 0 : i32
    return %arg1, %c0_i32, %c0_i32_0 : i32, i32, i32
  }
  func.func @transform_10(%arg0: i32, %arg1: i32) -> (i32, i32, i32) {
    %c0_i32 = arith.constant 0 : i32
    %c0_i32_0 = arith.constant 0 : i32
    %c0_i32_1 = arith.constant 0 : i32
    return %arg0, %c0_i32, %c0_i32_0 : i32, i32, i32
  }
}

</mosaic_0001>

<llo_original>
// kernel: tpu_custom_call.1
$region0: #{tpu_custom_call.1}
  #allocation0 [shape = 'u32[]', space=smem, size = 0x4, offset = 0x4, fixed_abs, tag = 'smem constant byte address 0x4 - core index']
  #allocation1 [shape = 'u32[144,128]{1,0:T(1,128)}', space=vmem, size = 0x12000, scoped, tag = 'internal scratch']
  #allocation2 [shape = 'bf16[16,32]{1,0:T(16,128)(2,1)}', space=vmem, size = 0x1000, scoped, tag = 'scratch operand']
  #allocation3 [shape = 'bf16[32,32]{1,0:T(16,128)(2,1)}', space=vmem, size = 0x2000, scoped, tag = 'scratch operand']
  #allocation4 [shape = 'f32[32,32]{1,0:T(8,128)}', space=vmem, size = 0x4000, scoped, tag = 'scratch operand']
  %s0 = inlined_call_operand.hbm [shape: f32[4,8,32], index: 0, kind: input, shape index: {}]
  %s1 = inlined_call_operand.hbm [shape: f32[4,16,32], index: 1, kind: input, shape index: {}]
  %s2 = inlined_call_operand.vmem [shape: f32[1,32], index: 2, kind: input, shape index: {}]
  %s3 = inlined_call_operand.vmem [shape: f32[1,32], index: 3, kind: input, shape index: {}]
  %s4 = inlined_call_operand.hbm [shape: f32[1,32], index: 4, kind: input, shape index: {}]
  %s5 = inlined_call_operand.hbm [shape: f32[1,32], index: 5, kind: input, shape index: {}]
  %s6 = inlined_call_operand.vmem [shape: bf16[1,32,32], index: 6, kind: input, shape index: {}]
  %s7 = inlined_call_operand.hbm [shape: bf16[1,32,32], index: 7, kind: input, shape index: {}]
  %s8 = inlined_call_operand.hbm [shape: bf16[1,32,32], index: 8, kind: input, shape index: {}]
  %s9 = inlined_call_operand.vmem [shape: bf16[1,32,32], index: 9, kind: input, shape index: {}]
  %s10 = inlined_call_operand.hbm [shape: f32[4,16,32], index: 10, kind: output, shape index: {}]
  %s11 = sld [smem:[#allocation0]]
  $region105: #{tpu_custom_call.1} parent=0
    _
  %s13 = ssub.s32 1, %s11
  %s14 = scalar_select 0, %s13, %s11
  $region1: #{tpu_custom_call.1} parent=0
    #allocation5 [shape = 'u8[16384]{0}', space=vmem, size = 0x4000, scoped, tag = 'input window, operand 0']
    #allocation6 [shape = 's32[2]{0}', space=sflag, size = 0x8, scoped, tag = 'scoped memory for tpu_custom_call.1']
    #allocation7 [shape = 's32[2]{0}', space=sflag, size = 0x8, scoped, tag = 'scoped memory for tpu_custom_call.1']
    #allocation8 [shape = 'u8[32768]{0}', space=vmem, size = 0x8000, scoped, tag = 'input window, operand 1']
    #allocation9 [shape = 's32[2]{0}', space=sflag, size = 0x8, scoped, tag = 'scoped memory for tpu_custom_call.1']
    #allocation10 [shape = 'u8[512]{0}', space=vmem, size = 0x400, scoped, tag = 'input window, operand 4, single buffered']
    #allocation11 [shape = 'u8[512]{0}', space=vmem, size = 0x400, scoped, tag = 'input window, operand 5, single buffered']
    #allocation12 [shape = 's32[1]{0}', space=sflag, size = 0x4, scoped, tag = 'scoped memory for tpu_custom_call.1']
    #allocation13 [shape = 'u8[8192]{0}', space=vmem, size = 0x2000, scoped, tag = 'input window, operand 7, single buffered']
    #allocation14 [shape = 'u8[8192]{0}', space=vmem, size = 0x2000, scoped, tag = 'input window, operand 8, single buffered']
    #allocation15 [shape = 's32[1]{0}', space=sflag, size = 0x4, scoped, tag = 'scoped memory for tpu_custom_call.1']
    #allocation16 [shape = 'u8[32768]{0}', space=vmem, size = 0x8000, scoped, tag = 'output window, operand 0']
    %15 = vsyncpa [#allocation6], 0
    %s16 = scalar_lea.sflag [#allocation6], 1
    %17 = vsyncpa %s16, 0
    %18 = vsyncpa [#allocation9], 0
    %s19 = scalar_lea.sflag [#allocation9], 1
    %20 = vsyncpa %s19, 0
    %21 = vsyncpa [#allocation12], 0
    %22 = vsyncpa [#allocation15], 0
    %23 = vsyncpa [#allocation7], 0
    %s24 = scalar_lea.sflag [#allocation7], 1
    %25 = vsyncpa %s24, 0
    loop: start=0, step=1, limit=4
    $region2: #{tpu_custom_call.1} parent=1 // loop_pre_header
      _
    $region3: #{tpu_custom_call.1} parent=1 // loop_header
      %s27 = sphi 0, %s31
      %p28 = scmp.ge.s32.totalorder %s27, 4
      %s34 = sphi 0, %s46
      %s35 = sphi 0, %s42
      %s36 = sphi 0, %s34
      %s37 = sphi 0, %s35
      %s38 = sphi 0, %s36
      %s39 = sphi 0, %s37
      %s49 = sphi 0, %s51
      %s52 = sphi 0, %s49
      %s53 = sphi 0, %s52
      %s69 = sphi 0, %s53
      %s75 = sphi 0, %s77
      %s78 = sphi 0, %s75
      %s79 = sphi 0, %s78
      %s95 = sphi 0, %s79
      %s99 = sphi 0, %s99
      %s101 = sphi 0, %s99
      %s102 = sphi 0, %s101
      %s116 = sphi 0, %s102
      %s120 = sphi 0, %s120
      %s122 = sphi 0, %s120
      %s123 = sphi 0, %s122
      %s137 = sphi 0, %s123
      %s141 = sphi 0, %s141
      %s143 = sphi 0, %s141
      %s144 = sphi 0, %s143
      %s158 = sphi 0, %s144
      %s162 = sphi 0, %s162
      %s164 = sphi 0, %s162
      %s165 = sphi 0, %s164
      %s179 = sphi 0, %s165
      %s185 = sphi 0, %s187
      %s188 = sphi 0, %s185
      %s189 = sphi 0, %s188
      %s205 = sphi 0, %s189
      %s211 = sphi 0, %s213
      %s214 = sphi 0, %s211
      %s215 = sphi 0, %s214
      %s231 = sphi 0, %s215
      %s237 = sphi 0, %s239
      %s240 = sphi 0, %s237
      %s241 = sphi 0, %s240
      %s257 = sphi 0, %s241
      %s263 = sphi 0, %s265
      %s266 = sphi 0, %s263
      %s267 = sphi 0, %s266
      %s283 = sphi 0, %s267
      %s289 = sphi 0, %s291
      %s292 = sphi 0, %s289
      %s293 = sphi 0, %s292
      %s309 = sphi 0, %s293
    $region4: #{tpu_custom_call.1} parent=1 // loop_header_branch
      %30 = sbr.rel (%p28) target = $region8
    $region5: #{tpu_custom_call.1} parent=1 // loop_body
      %s32 = ssub.s32 %s27, 1
      %s33 = ssub.s32 %s27, 2
      %s40 = sadd.s32 1, %s35
      %p41 = scmp.ge.s32.totalorder %s40, 1
      %s42 = scalar_select %p41, 0, %s40
      %s43 = sadd.s32 1, %s34
      %s44 = scalar_select %p41, %s43, %s34
      %p45 = scmp.ge.s32.totalorder %s44, 2
      %s46 = scalar_select %p45, 0, %s44
      %s47 = ssub.s32 %s34, %s46
      %p48 = scmp.eq.s32.totalorder %s47, 0
      %s50 = sadd.s32 %s49, 1
      %s51 = scalar_select %p48, %s49, %s50
      %p54 = pneg %p48
      %p55 = scmp.eq.s32.totalorder %s27, 1
      %p56 = por %p54, %p55
      %p57 = scmp.ne.s32.totalorder %s49, %s52
      %p58 = scmp.eq.s32.totalorder %s27, 0
      %p59 = por %p57, %p58
      %p60 = scmp.ne.s32.totalorder %s49, %s52
      %p61 = scmp.eq.s32.totalorder %s32, 1
      %p62 = por %p60, %p61
      %p63 = scmp.ne.s32.totalorder %s52, %s53
      %p64 = scmp.eq.s32.totalorder %s32, 0
      %p65 = por %p63, %p64
      %p66 = scmp.ne.s32.totalorder %s52, %s53
      %p67 = scmp.eq.s32.totalorder %s33, 1
      %p68 = por %p66, %p67
      %p70 = scmp.ne.s32.totalorder %s53, %s69
      %p71 = scmp.eq.s32.totalorder %s33, 0
      %p72 = por %p70, %p71
      %s73 = ssub.s32 %s34, %s46
      %p74 = scmp.eq.s32.totalorder %s73, 0
      %s76 = sadd.s32 %s75, 1
      %s77 = scalar_select %p74, %s75, %s76
      %p80 = pneg %p74
      %p81 = scmp.eq.s32.totalorder %s27, 1
      %p82 = por %p80, %p81
      %p83 = scmp.ne.s32.totalorder %s75, %s78
      %p84 = scmp.eq.s32.totalorder %s27, 0
      %p85 = por %p83, %p84
      %p86 = scmp.ne.s32.totalorder %s75, %s78
      %p87 = scmp.eq.s32.totalorder %s32, 1
      %p88 = por %p86, %p87
      %p89 = scmp.ne.s32.totalorder %s78, %s79
      %p90 = scmp.eq.s32.totalorder %s32, 0
      %p91 = por %p89, %p90
      %p92 = scmp.ne.s32.totalorder %s78, %s79
      %p93 = scmp.eq.s32.totalorder %s33, 1
      %p94 = por %p92, %p93
      %p96 = scmp.ne.s32.totalorder %s79, %s95
      %p97 = scmp.eq.s32.totalorder %s33, 0
      %p98 = por %p96, %p97
      %s100 = sadd.s32 %s99, 1
      %p103 = scmp.eq.s32.totalorder %s27, 1
      %p104 = scmp.ne.s32.totalorder %s99, %s101
      %p105 = scmp.eq.s32.totalorder %s27, 0
      %p106 = por %p104, %p105
      %p107 = scmp.ne.s32.totalorder %s99, %s101
      %p108 = scmp.eq.s32.totalorder %s32, 1
      %p109 = por %p107, %p108
      %p110 = scmp.ne.s32.totalorder %s101, %s102
      %p111 = scmp.eq.s32.totalorder %s32, 0
      %p112 = por %p110, %p111
      %p113 = scmp.ne.s32.totalorder %s101, %s102
      %p114 = scmp.eq.s32.totalorder %s33, 1
      %p115 = por %p113, %p114
      %p117 = scmp.ne.s32.totalorder %s102, %s116
      %p118 = scmp.eq.s32.totalorder %s33, 0
      %p119 = por %p117, %p118
      %s121 = sadd.s32 %s120, 1
      %p124 = scmp.eq.s32.totalorder %s27, 1
      %p125 = scmp.ne.s32.totalorder %s120, %s122
      %p126 = scmp.eq.s32.totalorder %s27, 0
      %p127 = por %p125, %p126
      %p128 = scmp.ne.s32.totalorder %s120, %s122
      %p129 = scmp.eq.s32.totalorder %s32, 1
      %p130 = por %p128, %p129
      %p131 = scmp.ne.s32.totalorder %s122, %s123
      %p132 = scmp.eq.s32.totalorder %s32, 0
      %p133 = por %p131, %p132
      %p134 = scmp.ne.s32.totalorder %s122, %s123
      %p135 = scmp.eq.s32.totalorder %s33, 1
      %p136 = por %p134, %p135
      %p138 = scmp.ne.s32.totalorder %s123, %s137
      %p139 = scmp.eq.s32.totalorder %s33, 0
      %p140 = por %p138, %p139
      %s142 = sadd.s32 %s141, 1
      %p145 = scmp.eq.s32.totalorder %s27, 1
      %p146 = scmp.ne.s32.totalorder %s141, %s143
      %p147 = scmp.eq.s32.totalorder %s27, 0
      %p148 = por %p146, %p147
      %p149 = scmp.ne.s32.totalorder %s141, %s143
      %p150 = scmp.eq.s32.totalorder %s32, 1
      %p151 = por %p149, %p150
      %p152 = scmp.ne.s32.totalorder %s143, %s144
      %p153 = scmp.eq.s32.totalorder %s32, 0
      %p154 = por %p152, %p153
      %p155 = scmp.ne.s32.totalorder %s143, %s144
      %p156 = scmp.eq.s32.totalorder %s33, 1
      %p157 = por %p155, %p156
      %p159 = scmp.ne.s32.totalorder %s144, %s158
      %p160 = scmp.eq.s32.totalorder %s33, 0
      %p161 = por %p159, %p160
      %s163 = sadd.s32 %s162, 1
      %p166 = scmp.eq.s32.totalorder %s27, 1
      %p167 = scmp.ne.s32.totalorder %s162, %s164
      %p168 = scmp.eq.s32.totalorder %s27, 0
      %p169 = por %p167, %p168
      %p170 = scmp.ne.s32.totalorder %s162, %s164
      %p171 = scmp.eq.s32.totalorder %s32, 1
      %p172 = por %p170, %p171
      %p173 = scmp.ne.s32.totalorder %s164, %s165
      %p174 = scmp.eq.s32.totalorder %s32, 0
      %p175 = por %p173, %p174
      %p176 = scmp.ne.s32.totalorder %s164, %s165
      %p177 = scmp.eq.s32.totalorder %s33, 1
      %p178 = por %p176, %p177
      %p180 = scmp.ne.s32.totalorder %s165, %s179
      %p181 = scmp.eq.s32.totalorder %s33, 0
      %p182 = por %p180, %p181
      %s183 = ssub.s32 %s35, %s42
      %p184 = scmp.eq.s32.totalorder %s183, 0
      %s186 = sadd.s32 %s185, 1
      %s187 = scalar_select %p184, %s185, %s186
      %p190 = pneg %p184
      %p191 = scmp.eq.s32.totalorder %s27, 1
      %p192 = por %p190, %p191
      %p193 = scmp.ne.s32.totalorder %s185, %s188
      %p194 = scmp.eq.s32.totalorder %s27, 0
      %p195 = por %p193, %p194
      %p196 = scmp.ne.s32.totalorder %s185, %s188
      %p197 = scmp.eq.s32.totalorder %s32, 1
      %p198 = por %p196, %p197
      %p199 = scmp.ne.s32.totalorder %s188, %s189
      %p200 = scmp.eq.s32.totalorder %s32, 0
      %p201 = por %p199, %p200
      %p202 = scmp.ne.s32.totalorder %s188, %s189
      %p203 = scmp.eq.s32.totalorder %s33, 1
      %p204 = por %p202, %p203
      %p206 = scmp.ne.s32.totalorder %s189, %s205
      %p207 = scmp.eq.s32.totalorder %s33, 0
      %p208 = por %p206, %p207
      %s209 = ssub.s32 %s35, %s42
      %p210 = scmp.eq.s32.totalorder %s209, 0
      %s212 = sadd.s32 %s211, 1
      %s213 = scalar_select %p210, %s211, %s212
      %p216 = pneg %p210
      %p217 = scmp.eq.s32.totalorder %s27, 1
      %p218 = por %p216, %p217
      %p219 = scmp.ne.s32.totalorder %s211, %s214
      %p220 = scmp.eq.s32.totalorder %s27, 0
      %p221 = por %p219, %p220
      %p222 = scmp.ne.s32.totalorder %s211, %s214
      %p223 = scmp.eq.s32.totalorder %s32, 1
      %p224 = por %p222, %p223
      %p225 = scmp.ne.s32.totalorder %s214, %s215
      %p226 = scmp.eq.s32.totalorder %s32, 0
      %p227 = por %p225, %p226
      %p228 = scmp.ne.s32.totalorder %s214, %s215
      %p229 = scmp.eq.s32.totalorder %s33, 1
      %p230 = por %p228, %p229
      %p232 = scmp.ne.s32.totalorder %s215, %s231
      %p233 = scmp.eq.s32.totalorder %s33, 0
      %p234 = por %p232, %p233
      %s235 = ssub.s32 %s35, %s42
      %p236 = scmp.eq.s32.totalorder %s235, 0
      %s238 = sadd.s32 %s237, 1
      %s239 = scalar_select %p236, %s237, %s238
      %p242 = pneg %p236
      %p243 = scmp.eq.s32.totalorder %s27, 1
      %p244 = por %p242, %p243
      %p245 = scmp.ne.s32.totalorder %s237, %s240
      %p246 = scmp.eq.s32.totalorder %s27, 0
      %p247 = por %p245, %p246
      %p248 = scmp.ne.s32.totalorder %s237, %s240
      %p249 = scmp.eq.s32.totalorder %s32, 1
      %p250 = por %p248, %p249
      %p251 = scmp.ne.s32.totalorder %s240, %s241
      %p252 = scmp.eq.s32.totalorder %s32, 0
      %p253 = por %p251, %p252
      %p254 = scmp.ne.s32.totalorder %s240, %s241
      %p255 = scmp.eq.s32.totalorder %s33, 1
      %p256 = por %p254, %p255
      %p258 = scmp.ne.s32.totalorder %s241, %s257
      %p259 = scmp.eq.s32.totalorder %s33, 0
      %p260 = por %p258, %p259
      %s261 = ssub.s32 %s35, %s42
      %p262 = scmp.eq.s32.totalorder %s261, 0
      %s264 = sadd.s32 %s263, 1
      %s265 = scalar_select %p262, %s263, %s264
      %p268 = pneg %p262
      %p269 = scmp.eq.s32.totalorder %s27, 1
      %p270 = por %p268, %p269
      %p271 = scmp.ne.s32.totalorder %s263, %s266
      %p272 = scmp.eq.s32.totalorder %s27, 0
      %p273 = por %p271, %p272
      %p274 = scmp.ne.s32.totalorder %s263, %s266
      %p275 = scmp.eq.s32.totalorder %s32, 1
      %p276 = por %p274, %p275
      %p277 = scmp.ne.s32.totalorder %s266, %s267
      %p278 = scmp.eq.s32.totalorder %s32, 0
      %p279 = por %p277, %p278
      %p280 = scmp.ne.s32.totalorder %s266, %s267
      %p281 = scmp.eq.s32.totalorder %s33, 1
      %p282 = por %p280, %p281
      %p284 = scmp.ne.s32.totalorder %s267, %s283
      %p285 = scmp.eq.s32.totalorder %s33, 0
      %p286 = por %p284, %p285
      %s287 = ssub.s32 %s34, %s46
      %p288 = scmp.eq.s32.totalorder %s287, 0
      %s290 = sadd.s32 %s289, 1
      %s291 = scalar_select %p288, %s289, %s290
      %p294 = pneg %p288
      %p295 = scmp.eq.s32.totalorder %s27, 1
      %p296 = por %p294, %p295
      %p297 = scmp.ne.s32.totalorder %s289, %s292
      %p298 = scmp.eq.s32.totalorder %s27, 0
      %p299 = por %p297, %p298
      %p300 = scmp.ne.s32.totalorder %s289, %s292
      %p301 = scmp.eq.s32.totalorder %s32, 1
      %p302 = por %p300, %p301
      %p303 = scmp.ne.s32.totalorder %s292, %s293
      %p304 = scmp.eq.s32.totalorder %s32, 0
      %p305 = por %p303, %p304
      %p306 = scmp.ne.s32.totalorder %s292, %s293
      %p307 = scmp.eq.s32.totalorder %s33, 1
      %p308 = por %p306, %p307
      %p310 = scmp.ne.s32.totalorder %s293, %s309
      %p311 = scmp.eq.s32.totalorder %s33, 0
      %p312 = por %p310, %p311
      %p313 = scmp.le.s32.totalorder 1, %s27
      %p314 = scmp.lt.s32.totalorder %s27, 3
      %p315 = pnand %p313, %p314
      %p316 = pneg %p315
      // Predicated region
      $region9: #{tpu_custom_call.1} parent=5 // pred_check
        _
      $region10: #{tpu_custom_call.1} parent=5 // pred_check_branch
        %318 = sbr.rel (%p315) target = $region12
      $region11: #{tpu_custom_call.1} parent=5 // pred_region
        %s319 = ssub.s32 %s27, 1
        // Predicated region
        $region13: #{tpu_custom_call.1} parent=11 // pred_check
          %p320 = pneg %p112
        $region14: #{tpu_custom_call.1} parent=11 // pred_check_branch
          %322 = sbr.rel (%p320) target = $region16
        $region15: #{tpu_custom_call.1} parent=11 // pred_region
          _
        $region16: #{tpu_custom_call.1} parent=11 // pred_fallthru
          _
        // Predicated region
        $region17: #{tpu_custom_call.1} parent=11 // pred_check
          %p323 = pneg %p133
        $region18: #{tpu_custom_call.1} parent=11 // pred_check_branch
          %325 = sbr.rel (%p323) target = $region20
        $region19: #{tpu_custom_call.1} parent=11 // pred_region
          _
        $region20: #{tpu_custom_call.1} parent=11 // pred_fallthru
          _
        // Predicated region
        $region21: #{tpu_custom_call.1} parent=11 // pred_check
          %p326 = pneg %p154
        $region22: #{tpu_custom_call.1} parent=11 // pred_check_branch
          %328 = sbr.rel (%p326) target = $region24
        $region23: #{tpu_custom_call.1} parent=11 // pred_region
          %s330 = ssub.s32 16, 16
          %331 = vsyncadd [#allocation9], %s330
          %s333 = sshll.u32 [#allocation10], 4
          %s334 = int_to_ptr.vmem [resolvable:$true] %s333
          %336 = dma.hbm_to_vmem [thread:$0]  %s4, 16, %s334, [#allocation9]
        $region24: #{tpu_custom_call.1} parent=11 // pred_fallthru
          _
        // Predicated region
        $region25: #{tpu_custom_call.1} parent=11 // pred_check
          %p337 = pneg %p175
        $region26: #{tpu_custom_call.1} parent=11 // pred_check_branch
          %339 = sbr.rel (%p337) target = $region28
        $region27: #{tpu_custom_call.1} parent=11 // pred_region
          %s341 = ssub.s32 16, 16
          %342 = vsyncadd [#allocation12], %s341
          %s344 = sshll.u32 [#allocation11], 4
          %s345 = int_to_ptr.vmem [resolvable:$true] %s344
          %347 = dma.hbm_to_vmem [thread:$0]  %s5, 16, %s345, [#allocation12]
        $region28: #{tpu_custom_call.1} parent=11 // pred_fallthru
          _
        // Predicated region
        $region29: #{tpu_custom_call.1} parent=11 // pred_check
          %p348 = pneg %p201
        $region30: #{tpu_custom_call.1} parent=11 // pred_check_branch
          %350 = sbr.rel (%p348) target = $region32
        $region31: #{tpu_custom_call.1} parent=11 // pred_region
          %p351 = scmp.lt.s32.totalorder %s37, 0
          %s352 = scalar_select %p351, %s37, 0
          %s353 = smul.addr %s352, 4
          %s354 = smul.addr %s353, 4
          %s355 = scalar_lea.vmem %s6, %s354
        $region32: #{tpu_custom_call.1} parent=11 // pred_fallthru
          _
        // Predicated region
        $region33: #{tpu_custom_call.1} parent=11 // pred_check
          %p356 = pneg %p227
        $region34: #{tpu_custom_call.1} parent=11 // pred_check_branch
          %358 = sbr.rel (%p356) target = $region36
        $region35: #{tpu_custom_call.1} parent=11 // pred_region
          %s360 = ssub.s32 256, 256
          %361 = vsyncadd [#allocation12], %s360
          %s362 = smul.addr %s37, 4
          %s363 = smul.addr %s362, 64
          %s364 = scalar_lea.hbm %s7, %s363
          %s365 = sshll.u32 [#allocation13], 4
          %s366 = int_to_ptr.vmem [resolvable:$true] %s365
          %371 = dma.hbm_to_vmem [thread:$0]  %s364, 256, %s366, [#allocation12], 64, 64, 4
        $region36: #{tpu_custom_call.1} parent=11 // pred_fallthru
          _
        // Predicated region
        $region37: #{tpu_custom_call.1} parent=11 // pred_check
          %p372 = pneg %p253
        $region38: #{tpu_custom_call.1} parent=11 // pred_check_branch
          %374 = sbr.rel (%p372) target = $region40
        $region39: #{tpu_custom_call.1} parent=11 // pred_region
          %s376 = ssub.s32 256, 256
          %377 = vsyncadd [#allocation15], %s376
          %s378 = smul.addr %s37, 4
          %s379 = smul.addr %s378, 64
          %s380 = scalar_lea.hbm %s8, %s379
          %s381 = sshll.u32 [#allocation14], 4
          %s382 = int_to_ptr.vmem [resolvable:$true] %s381
          %387 = dma.hbm_to_vmem [thread:$0]  %s380, 256, %s382, [#allocation15], 64, 64, 4
        $region40: #{tpu_custom_call.1} parent=11 // pred_fallthru
          _
        // Predicated region
        $region41: #{tpu_custom_call.1} parent=11 // pred_check
          %p388 = pneg %p279
        $region42: #{tpu_custom_call.1} parent=11 // pred_check_branch
          %390 = sbr.rel (%p388) target = $region44
        $region43: #{tpu_custom_call.1} parent=11 // pred_region
          %p391 = scmp.lt.s32.totalorder %s37, 0
          %s392 = scalar_select %p391, %s37, 0
          %s393 = smul.addr %s392, 4
          %s394 = smul.addr %s393, 4
          %s395 = scalar_lea.vmem %s9, %s394
        $region44: #{tpu_custom_call.1} parent=11 // pred_fallthru
          _
      $region12: #{tpu_custom_call.1} parent=5 // pred_fallthru
        _
      %p396 = scmp.lt.s32.totalorder %s27, 2
      // Predicated region
      $region45: #{tpu_custom_call.1} parent=5 // pred_check
        %p397 = pneg %p396
      $region46: #{tpu_custom_call.1} parent=5 // pred_check_branch
        %399 = sbr.rel (%p397) target = $region48
      $region47: #{tpu_custom_call.1} parent=5 // pred_region
        // Predicated region
        $region49: #{tpu_custom_call.1} parent=47 // pred_check
          %p400 = pneg %p59
        $region50: #{tpu_custom_call.1} parent=47 // pred_check_branch
          %402 = sbr.rel (%p400) target = $region52
        $region51: #{tpu_custom_call.1} parent=47 // pred_region
          %s403 = sand.u32 %s49, 1
          %s404 = scalar_lea.sflag [#allocation6], %s403
          %s405 = sand.u32 %s49, 1
          %s406 = smul.addr %s405, 16
          %s407 = scalar_lea.vmem [#allocation5], %s406
          %s408 = smul.u32 2, %s34
          %s410 = ssub.s32 256, 256
          %411 = vsyncadd %s404, %s410
          %s412 = smul.addr %s408, 128
          %s413 = scalar_lea.hbm %s0, %s412
          %s414 = sshll.u32 %s407, 4
          %s415 = int_to_ptr.vmem [resolvable:$true] %s414
          %420 = dma.hbm_to_vmem [thread:$0]  %s413, 256, %s415, %s404, 128, 128, 8
        $region52: #{tpu_custom_call.1} parent=47 // pred_fallthru
          _
        // Predicated region
        $region53: #{tpu_custom_call.1} parent=47 // pred_check
          %p421 = pneg %p85
        $region54: #{tpu_custom_call.1} parent=47 // pred_check_branch
          %423 = sbr.rel (%p421) target = $region56
        $region55: #{tpu_custom_call.1} parent=47 // pred_region
          %s424 = sand.u32 %s27, 1
          %s425 = scalar_lea.sflag [#allocation9], %s424
          %s426 = sand.u32 %s75, 1
          %s427 = smul.addr %s426, 32
          %s428 = scalar_lea.vmem [#allocation8], %s427
          %s429 = smul.u32 2, %s34
          %s431 = ssub.s32 512, 512
          %432 = vsyncadd %s425, %s431
          %s433 = smul.addr %s429, 2
          %s434 = smul.addr %s433, 128
          %s435 = scalar_lea.hbm %s1, %s434
          %s436 = sshll.u32 %s428, 4
          %s437 = int_to_ptr.vmem [resolvable:$true] %s436
          %442 = dma.hbm_to_vmem [thread:$0]  %s435, 512, %s437, %s425, 128, 128, 8
        $region56: #{tpu_custom_call.1} parent=47 // pred_fallthru
          _
      $region48: #{tpu_custom_call.1} parent=5 // pred_fallthru
        _
      %p443 = scmp.le.s32.totalorder 1, %s27
      %p444 = scmp.lt.s32.totalorder %s27, 3
      %p445 = pnand %p443, %p444
      %p446 = pneg %p445
      // Predicated region
      $region57: #{tpu_custom_call.1} parent=5 // pred_check
        _
      $region58: #{tpu_custom_call.1} parent=5 // pred_check_branch
        %448 = sbr.rel (%p445) target = $region60
      $region59: #{tpu_custom_call.1} parent=5 // pred_region
        %s449 = ssub.s32 %s27, 1
        %s450 = sand.u32 %s52, 1
        %s451 = scalar_lea.sflag [#allocation6], %s450
        %s452 = sand.u32 %s52, 1
        %s453 = smul.addr %s452, 16
        %s454 = scalar_lea.vmem [#allocation5], %s453
        // Predicated region
        $region61: #{tpu_custom_call.1} parent=59 // pred_check
          %p455 = pneg %p65
        $region62: #{tpu_custom_call.1} parent=59 // pred_check_branch
          %457 = sbr.rel (%p455) target = $region64
        $region63: #{tpu_custom_call.1} parent=59 // pred_region
          %458 = dma.done %s451, 256
        $region64: #{tpu_custom_call.1} parent=59 // pred_fallthru
          _
        %s459 = sand.u32 %s32, 1
        %s460 = scalar_lea.sflag [#allocation9], %s459
        %s461 = sand.u32 %s78, 1
        %s462 = smul.addr %s461, 32
        %s463 = scalar_lea.vmem [#allocation8], %s462
        // Predicated region
        $region65: #{tpu_custom_call.1} parent=59 // pred_check
          %p464 = pneg %p91
        $region66: #{tpu_custom_call.1} parent=59 // pred_check_branch
          %466 = sbr.rel (%p464) target = $region68
        $region67: #{tpu_custom_call.1} parent=59 // pred_region
          %467 = dma.done %s460, 512
        $region68: #{tpu_custom_call.1} parent=59 // pred_fallthru
          _
        // Predicated region
        $region69: #{tpu_custom_call.1} parent=59 // pred_check
          %p468 = pneg %p154
        $region70: #{tpu_custom_call.1} parent=59 // pred_check_branch
          %470 = sbr.rel (%p468) target = $region72
        $region71: #{tpu_custom_call.1} parent=59 // pred_region
          %471 = dma.done [#allocation9], 16
        $region72: #{tpu_custom_call.1} parent=59 // pred_fallthru
          _
        // Predicated region
        $region73: #{tpu_custom_call.1} parent=59 // pred_check
          %p472 = pneg %p175
        $region74: #{tpu_custom_call.1} parent=59 // pred_check_branch
          %474 = sbr.rel (%p472) target = $region76
        $region75: #{tpu_custom_call.1} parent=59 // pred_region
          %475 = dma.done [#allocation12], 16
        $region76: #{tpu_custom_call.1} parent=59 // pred_fallthru
          _
        // Predicated region
        $region77: #{tpu_custom_call.1} parent=59 // pred_check
          %p476 = pneg %p227
        $region78: #{tpu_custom_call.1} parent=59 // pred_check_branch
          %478 = sbr.rel (%p476) target = $region80
        $region79: #{tpu_custom_call.1} parent=59 // pred_region
          %479 = dma.done [#allocation12], 256
        $region80: #{tpu_custom_call.1} parent=59 // pred_fallthru
          _
        // Predicated region
        $region81: #{tpu_custom_call.1} parent=59 // pred_check
          %p480 = pneg %p253
        $region82: #{tpu_custom_call.1} parent=59 // pred_check_branch
          %482 = sbr.rel (%p480) target = $region84
        $region83: #{tpu_custom_call.1} parent=59 // pred_region
          %483 = dma.done [#allocation15], 256
        $region84: #{tpu_custom_call.1} parent=59 // pred_fallthru
          _
        %s484 = sand.u32 %s52, 1
        %s485 = scalar_lea.sflag [#allocation6], %s484
        %s486 = sand.u32 %s52, 1
        %s487 = smul.addr %s486, 16
        %s488 = scalar_lea.vmem [#allocation5], %s487
        %p489 = pneg %p65
        %p490 = pneg %p62
        %s491 = sand.u32 %s32, 1
        %s492 = scalar_lea.sflag [#allocation9], %s491
        %s493 = sand.u32 %s78, 1
        %s494 = smul.addr %s493, 32
        %s495 = scalar_lea.vmem [#allocation8], %s494
        %p496 = pneg %p91
        %p497 = pneg %p88
        %p498 = pneg %p112
        %p499 = pneg %p109
        %p500 = pneg %p133
        %p501 = pneg %p130
        %p502 = pneg %p154
        %p503 = pneg %p151
        %p504 = pneg %p175
        %p505 = pneg %p172
        %p506 = scmp.lt.s32.totalorder %s37, 0
        %s507 = scalar_select %p506, %s37, 0
        %s508 = smul.addr %s507, 4
        %s509 = smul.addr %s508, 4
        %s510 = scalar_lea.vmem %s6, %s509
        %p511 = pneg %p201
        %p512 = pneg %p198
        %p513 = pneg %p227
        %p514 = pneg %p224
        %p515 = pneg %p253
        %p516 = pneg %p250
        %p517 = scmp.lt.s32.totalorder %s37, 0
        %s518 = scalar_select %p517, %s37, 0
        %s519 = smul.addr %s518, 4
        %s520 = smul.addr %s519, 4
        %s521 = scalar_lea.vmem %s9, %s520
        %p522 = pneg %p279
        %p523 = pneg %p276
        %p524 = pneg %p305
        %p525 = pneg %p302
        %s526 = sand.u32 %s292, 1
        %s527 = scalar_lea.sflag [#allocation7], %s526
        %s528 = sand.u32 %s292, 1
        %s529 = smul.addr %s528, 32
        %s530 = scalar_lea.vmem [#allocation16], %s529
        %s531 = smul.u32 2, %s36
        %s532 = smul.u32 2, %s36
        %p533 = scmp.lt.s32.totalorder %s37, 0
        %s534 = scalar_select %p533, %s37, 0
        %s535 = smul.addr %s534, 4
        %s536 = smul.addr %s535, 4
        %s537 = scalar_lea.vmem %s6, %s536
        %p538 = scmp.lt.s32.totalorder %s37, 0
        %s539 = scalar_select %p538, %s37, 0
        %s540 = smul.addr %s539, 4
        %s541 = smul.addr %s540, 4
        %s542 = scalar_lea.vmem %s9, %s541
        %s543 = smul.u32 2, %s36
        %p545 = scmp.eq.s32.totalorder %s37, 0
        // Predicated region
        $region85: #{tpu_custom_call.1} parent=59 // pred_check
          %p546 = pneg %p545
        $region86: #{tpu_custom_call.1} parent=59 // pred_check_branch
          %548 = sbr.rel (%p546) target = $region88
        $region87: #{tpu_custom_call.1} parent=59 // pred_region
          %v549 = vld [vmem:[%s454] sm:$0xff]
          %v550 = vld [vmem:[%s454 + $0x8] sm:$0xff]
          %v551 = vld [vmem:[%s2] sm:$0x1]
          %v552 = vld [vmem:[%s3] sm:$0x1]
          %vm553 = vcmask 261120
          %v554 = vsel %vm553, %v549, 0.0
          %555 = vadd.xlane.f32.xlu0 %v554
          %v556 = vpop.xlane.xlu0 %555
          %v557 = vsel %vm553, %v550, 0.0
          %558 = vadd.xlane.f32.xlu0 %v557
          %v559 = vpop.xlane.xlu0 %558
          %v560 = vrcp.pop 32.0
          %v561 = vmul.f32 %v556, %v560
          %v562 = vmul.f32 %v559, %v560
          %v563 = vsub.f32 %v549, %v561
          %v564 = vsub.f32 %v550, %v562
          %v565 = vmul.f32 %v563, %v563
          %v566 = vmul.f32 %v564, %v564
          %v567 = vsel %vm553, %v565, 0.0
          %568 = vadd.xlane.f32.xlu0 %v567
          %v569 = vpop.xlane.xlu0 %568
          %v570 = vsel %vm553, %v566, 0.0
          %571 = vadd.xlane.f32.xlu0 %v570
          %v572 = vpop.xlane.xlu0 %571
          %v573 = vmul.f32 %v569, %v560
          %v574 = vmul.f32 %v572, %v560
          %v575 = vadd.f32 %v573, 1e-05
          %v576 = vadd.f32 %v574, 1e-05
          %v577 = vrsqrt.pop %v575
          %v578 = vrsqrt.pop %v576
          %v579 = vmul.f32 %v563, %v577
          %v580 = vmul.f32 %v564, %v578
          %v582 = vlaneseq
          %v583 = vshrl.u32 %v582, 7
          %v584 = vsub.s32 0, %v583
          %v585 = vrot.slane %v551, %v584
          %v587 = vmul.f32 %v579, %v585
          %v588 = vmul.f32 %v580, %v585
          %v590 = vlaneseq
          %v591 = vshrl.u32 %v590, 7
          %v592 = vsub.s32 0, %v591
          %v593 = vrot.slane %v552, %v592
          %v595 = vadd.f32 %v587, %v593
          %v596 = vadd.f32 %v588, %v593
          %v597 = vld [vmem:[%s463] sm:$0xff]
          %v598 = vld [vmem:[%s463 + $0x8] sm:$0xff]
          %v599 = vld [vmem:[%s463 + $0x10] sm:$0xff]
          %v600 = vld [vmem:[%s463 + $0x18] sm:$0xff]
          %v601 = vld [vmem:[#allocation10] sm:$0x1]
          %v602 = vld [vmem:[#allocation11] sm:$0x1]
          %v603 = vsel %vm553, %v597, 0.0
          %604 = vadd.xlane.f32.xlu0 %v603
          %v605 = vpop.xlane.xlu0 %604
          %v606 = vsel %vm553, %v598, 0.0
          %607 = vadd.xlane.f32.xlu0 %v606
          %v608 = vpop.xlane.xlu0 %607
          %v609 = vsel %vm553, %v599, 0.0
          %610 = vadd.xlane.f32.xlu0 %v609
          %v611 = vpop.xlane.xlu0 %610
          %v612 = vsel %vm553, %v600, 0.0
          %613 = vadd.xlane.f32.xlu0 %v612
          %v614 = vpop.xlane.xlu0 %613
          %v615 = vmul.f32 %v605, %v560
          %v616 = vmul.f32 %v608, %v560
          %v617 = vmul.f32 %v611, %v560
          %v618 = vmul.f32 %v614, %v560
          %v619 = vsub.f32 %v597, %v615
          %v620 = vsub.f32 %v598, %v616
          %v621 = vsub.f32 %v599, %v617
          %v622 = vsub.f32 %v600, %v618
          %v623 = vmul.f32 %v619, %v619
          %v624 = vmul.f32 %v620, %v620
          %v625 = vmul.f32 %v621, %v621
          %v626 = vmul.f32 %v622, %v622
          %v627 = vsel %vm553, %v623, 0.0
          %628 = vadd.xlane.f32.xlu0 %v627
          %v629 = vpop.xlane.xlu0 %628
          %v630 = vsel %vm553, %v624, 0.0
          %631 = vadd.xlane.f32.xlu0 %v630
          %v632 = vpop.xlane.xlu0 %631
          %v633 = vsel %vm553, %v625, 0.0
          %634 = vadd.xlane.f32.xlu0 %v633
          %v635 = vpop.xlane.xlu0 %634
          %v636 = vsel %vm553, %v626, 0.0
          %637 = vadd.xlane.f32.xlu0 %v636
          %v638 = vpop.xlane.xlu0 %637
          %v639 = vmul.f32 %v629, %v560
          %v640 = vmul.f32 %v632, %v560
          %v641 = vmul.f32 %v635, %v560
          %v642 = vmul.f32 %v638, %v560
          %v643 = vadd.f32 %v639, 1e-05
          %v644 = vadd.f32 %v640, 1e-05
          %v645 = vadd.f32 %v641, 1e-05
          %v646 = vadd.f32 %v642, 1e-05
          %v647 = vrsqrt.pop %v643
          %v648 = vrsqrt.pop %v644
          %v649 = vrsqrt.pop %v645
          %v650 = vrsqrt.pop %v646
          %v651 = vmul.f32 %v619, %v647
          %v652 = vmul.f32 %v620, %v648
          %v653 = vmul.f32 %v621, %v649
          %v654 = vmul.f32 %v622, %v650
          %v656 = vlaneseq
          %v657 = vshrl.u32 %v656, 7
          %v658 = vsub.s32 0, %v657
          %v659 = vrot.slane %v601, %v658
          %v661 = vmul.f32 %v651, %v659
          %v662 = vmul.f32 %v652, %v659
          %v663 = vmul.f32 %v653, %v659
          %v664 = vmul.f32 %v654, %v659
          %v666 = vlaneseq
          %v667 = vshrl.u32 %v666, 7
          %v668 = vsub.s32 0, %v667
          %v669 = vrot.slane %v602, %v668
          %v671 = vadd.f32 %v661, %v669
          %v672 = vadd.f32 %v662, %v669
          %v673 = vadd.f32 %v663, %v669
          %v674 = vadd.f32 %v664, %v669
          %v675 = vpack.c.bf16 %v596, %v595
          %676 = vst.msk [vmem:[#allocation2] sm:$0xff] %vm553, %v675
          %v677 = vpack.c.bf16 %v672, %v671
          %v678 = vpack.c.bf16 %v674, %v673
          %679 = vst.msk [vmem:[#allocation3] sm:$0xff] %vm553, %v677
          %680 = vst.msk [vmem:[#allocation3 + $0x8] sm:$0xff] %vm553, %v678
          %681 = vst.msk [vmem:[#allocation4] sm:$0xff] %vm553, 0.0
          %682 = vst.msk [vmem:[#allocation4 + $0x8] sm:$0xff] %vm553, 0.0
          %683 = vst.msk [vmem:[#allocation4 + $0x10] sm:$0xff] %vm553, 0.0
          %684 = vst.msk [vmem:[#allocation4 + $0x18] sm:$0xff] %vm553, 0.0
        $region88: #{tpu_custom_call.1} parent=59 // pred_fallthru
          _
        %v685 = vld [vmem:[#allocation2] sm:$0xff]
        %v686 = vld [vmem:[#allocation3] sm:$0xff]
        %v687 = vld [vmem:[#allocation3 + $0x8] sm:$0xff]
        %v688 = vld [vmem:[%s537] sm:$0xf]
        %v689 = vld [vmem:[%s537 + $0x4] sm:$0xf]
        %v690 = vld [vmem:[%s537 + $0x8] sm:$0xf]
        %v691 = vld [vmem:[%s537 + $0xc] sm:$0xf]
        %v696 = vunpack.c.l.b16 %v688
        %v697 = vunpack.c.l.b16 %v689
        %v698 = vunpack.c.l.b16 %v690
        %v699 = vunpack.c.l.b16 %v691
        %v700 = vpack.c.b16 %v697, %v696
        %v701 = vpack.c.b16 %v699, %v698
        %vm704 = vcmask 261120
        %v706 = vsel %vm704, %v686, 0
        %v709 = vsel %vm704, %v687, 0
        %711 = vmatprep.subr.bf16.mxu0 0
        %712 = vmatpush1.bf16.msra.mxu0 %v700
        %713 = vmatprep.subr.bf16.mxu0 0
        %714 = vmatpush1.bf16.msra.mxu0 %v701
        %715 = vmatprep.subr.bf16.mxu0 0
        %716 = vmatpush1.bf16.msra.mxu0 0
        %717 = vmatprep.subr.bf16.mxu0 0
        %718 = vmatpush1.bf16.msra.mxu0 0
        %719 = vmatprep.subr.bf16.mxu0 0
        %720 = vmatpush1.bf16.msra.mxu0 0
        %721 = vmatprep.subr.bf16.mxu0 0
        %722 = vmatpush1.bf16.msra.mxu0 0
        %723 = vmatprep.subr.bf16.mxu0 0
        %724 = vmatpush1.bf16.msra.mxu0 0
        %725 = vmatprep.subr.bf16.mxu0 0
        %726 = vmatpush1.bf16.msra.mxu0 0
        %727 = vmatprep.subr.bf16.mxu0 0
        %728 = vmatpush1.bf16.msra.mxu0 0
        %729 = vmatprep.subr.bf16.mxu0 0
        %730 = vmatpush1.bf16.msra.mxu0 0
        %731 = vmatprep.subr.bf16.mxu0 0
        %732 = vmatpush1.bf16.msra.mxu0 0
        %733 = vmatprep.subr.bf16.mxu0 0
        %734 = vmatpush1.bf16.msra.mxu0 0
        %735 = vmatprep.subr.bf16.mxu0 0
        %736 = vmatpush1.bf16.msra.mxu0 0
        %737 = vmatprep.subr.bf16.mxu0 0
        %738 = vmatpush1.bf16.msra.mxu0 0
        %739 = vmatprep.subr.bf16.mxu0 0
        %740 = vmatpush1.bf16.msra.mxu0 0
        %741 = vmatprep.subr.bf16.mxu0 0
        %742 = vmatpush1.bf16.msra.mxu0 0
        %743 = vmatprep.mubr.bf16.mxu0 0
        %744 = vmatmul.mubr.bf16.gmra.mrb[0].mxu0 %v706
        %v745 = vpop.f32.mrb[0].mxu0
        %v746 = vadd.f32 0.0, %v745
        %v747 = vpop.f32.mrb[0].mxu0
        %v748 = vpop.f32.mrb[0].mxu0
        %v749 = vadd.f32 0.0, %v748
        %v750 = vpop.f32.mrb[0].mxu0
        %751 = vmatprep.mubr.bf16.mxu0 0
        %752 = vmatmul.mubr.bf16.gmra.mrb[0].mxu0 %v709
        %v753 = vpop.f32.mrb[0].mxu0
        %v754 = vadd.f32 0.0, %v753
        %v755 = vpop.f32.mrb[0].mxu0
        %v756 = vpop.f32.mrb[0].mxu0
        %v757 = vadd.f32 0.0, %v756
        %v758 = vpop.f32.mrb[0].mxu0
        %759 = vdwg.mxu0
        %v760 = vpack.c.bf16 %v749, %v746
        %v761 = vpack.c.bf16 %v757, %v754
        %v762 = vld [vmem:[#allocation13] sm:$0xf]
        %v763 = vld [vmem:[#allocation13 + $0x4] sm:$0xf]
        %v764 = vld [vmem:[#allocation13 + $0x8] sm:$0xf]
        %v765 = vld [vmem:[#allocation13 + $0xc] sm:$0xf]
        %v770 = vunpack.c.l.b16 %v762
        %v771 = vunpack.c.l.b16 %v763
        %v772 = vunpack.c.l.b16 %v764
        %v773 = vunpack.c.l.b16 %v765
        %v774 = vpack.c.b16 %v771, %v770
        %v775 = vpack.c.b16 %v773, %v772
        %v779 = vsel %vm704, %v685, 0
        %781 = vmatprep.subr.bf16.mxu0 0
        %782 = vmatpush1.bf16.msra.mxu0 %v774
        %783 = vmatprep.subr.bf16.mxu0 0
        %784 = vmatpush1.bf16.msra.mxu0 %v775
        %785 = vmatprep.subr.bf16.mxu0 0
        %786 = vmatpush1.bf16.msra.mxu0 0
        %787 = vmatprep.subr.bf16.mxu0 0
        %788 = vmatpush1.bf16.msra.mxu0 0
        %789 = vmatprep.subr.bf16.mxu0 0
        %790 = vmatpush1.bf16.msra.mxu0 0
        %791 = vmatprep.subr.bf16.mxu0 0
        %792 = vmatpush1.bf16.msra.mxu0 0
        %793 = vmatprep.subr.bf16.mxu0 0
        %794 = vmatpush1.bf16.msra.mxu0 0
        %795 = vmatprep.subr.bf16.mxu0 0
        %796 = vmatpush1.bf16.msra.mxu0 0
        %797 = vmatprep.subr.bf16.mxu0 0
        %798 = vmatpush1.bf16.msra.mxu0 0
        %799 = vmatprep.subr.bf16.mxu0 0
        %800 = vmatpush1.bf16.msra.mxu0 0
        %801 = vmatprep.subr.bf16.mxu0 0
        %802 = vmatpush1.bf16.msra.mxu0 0
        %803 = vmatprep.subr.bf16.mxu0 0
        %804 = vmatpush1.bf16.msra.mxu0 0
        %805 = vmatprep.subr.bf16.mxu0 0
        %806 = vmatpush1.bf16.msra.mxu0 0
        %807 = vmatprep.subr.bf16.mxu0 0
        %808 = vmatpush1.bf16.msra.mxu0 0
        %809 = vmatprep.subr.bf16.mxu0 0
        %810 = vmatpush1.bf16.msra.mxu0 0
        %811 = vmatprep.subr.bf16.mxu0 0
        %812 = vmatpush1.bf16.msra.mxu0 0
        %813 = vmatprep.mubr.bf16.mxu0 0
        %814 = vmatmul.mubr.bf16.gmra.mrb[0].mxu0 %v779
        %v815 = vpop.f32.mrb[0].mxu0
        %v816 = vadd.f32 0.0, %v815
        %v817 = vpop.f32.mrb[0].mxu0
        %v818 = vpop.f32.mrb[0].mxu0
        %v819 = vadd.f32 0.0, %v818
        %v820 = vpop.f32.mrb[0].mxu0
        %821 = vdwg.mxu0
        %v822 = vpack.c.bf16 %v819, %v816
        %v823 = vld [vmem:[#allocation14] sm:$0xf]
        %v824 = vld [vmem:[#allocation14 + $0x4] sm:$0xf]
        %v825 = vld [vmem:[#allocation14 + $0x8] sm:$0xf]
        %v826 = vld [vmem:[#allocation14 + $0xc] sm:$0xf]
        %v831 = vunpack.c.l.b16 %v823
        %v832 = vunpack.c.l.b16 %v824
        %v833 = vunpack.c.l.b16 %v825
        %v834 = vunpack.c.l.b16 %v826
        %v835 = vpack.c.b16 %v832, %v831
        %v836 = vpack.c.b16 %v834, %v833
        %839 = vmatprep.subr.bf16.mxu0 0
        %840 = vmatpush1.bf16.msra.mxu0 %v835
        %841 = vmatprep.subr.bf16.mxu0 0
        %842 = vmatpush1.bf16.msra.mxu0 %v836
        %843 = vmatprep.subr.bf16.mxu0 0
        %844 = vmatpush1.bf16.msra.mxu0 0
        %845 = vmatprep.subr.bf16.mxu0 0
        %846 = vmatpush1.bf16.msra.mxu0 0
        %847 = vmatprep.subr.bf16.mxu0 0
        %848 = vmatpush1.bf16.msra.mxu0 0
        %849 = vmatprep.subr.bf16.mxu0 0
        %850 = vmatpush1.bf16.msra.mxu0 0
        %851 = vmatprep.subr.bf16.mxu0 0
        %852 = vmatpush1.bf16.msra.mxu0 0
        %853 = vmatprep.subr.bf16.mxu0 0
        %854 = vmatpush1.bf16.msra.mxu0 0
        %855 = vmatprep.subr.bf16.mxu0 0
        %856 = vmatpush1.bf16.msra.mxu0 0
        %857 = vmatprep.subr.bf16.mxu0 0
        %858 = vmatpush1.bf16.msra.mxu0 0
        %859 = vmatprep.subr.bf16.mxu0 0
        %860 = vmatpush1.bf16.msra.mxu0 0
        %861 = vmatprep.subr.bf16.mxu0 0
        %862 = vmatpush1.bf16.msra.mxu0 0
        %863 = vmatprep.subr.bf16.mxu0 0
        %864 = vmatpush1.bf16.msra.mxu0 0
        %865 = vmatprep.subr.bf16.mxu0 0
        %866 = vmatpush1.bf16.msra.mxu0 0
        %867 = vmatprep.subr.bf16.mxu0 0
        %868 = vmatpush1.bf16.msra.mxu0 0
        %869 = vmatprep.subr.bf16.mxu0 0
        %870 = vmatpush1.bf16.msra.mxu0 0
        %871 = vmatprep.mubr.bf16.mxu0 0
        %872 = vmatmul.mubr.bf16.gmra.mrb[0].mxu0 %v779
        %v873 = vpop.f32.mrb[0].mxu0
        %v874 = vadd.f32 0.0, %v873
        %v875 = vpop.f32.mrb[0].mxu0
        %v876 = vpop.f32.mrb[0].mxu0
        %v877 = vadd.f32 0.0, %v876
        %v878 = vpop.f32.mrb[0].mxu0
        %879 = vdwg.mxu0
        %v880 = vpack.c.bf16 %v877, %v874
        %v882 = vunpack.c.l.b16 %v822
        %v883 = vunpack.c.h.b16 %v822
        %v884 = vpack.c.b16 %v882, %v882
        %v885 = vpack.c.b16 %v883, %v883
        %v887 = vunpack.c.l.b16 %v880
        %v888 = vunpack.c.h.b16 %v880
        %v889 = vpack.c.b16 %v887, %v887
        %v890 = vpack.c.b16 %v888, %v888
        %vm891 = vcmask 64512
        %v893 = vsel %vm891, %v760, 0
        %v896 = vsel %vm891, %v884, 0
        %898 = vmatprep.subr.bf16.mxu0 0
        %899 = vmatpush1.bf16.xpose.msra.mxu0 %v896
        %900 = vmatprep.subr.bf16.mxu0 0
        %901 = vmatpush1.bf16.xpose.msra.mxu0 0
        %902 = vmatprep.subr.bf16.mxu0 0
        %903 = vmatpush1.bf16.xpose.msra.mxu0 0
        %904 = vmatprep.subr.bf16.mxu0 0
        %905 = vmatpush1.bf16.xpose.msra.mxu0 0
        %906 = vmatprep.subr.bf16.mxu0 0
        %907 = vmatpush1.bf16.xpose.msra.mxu0 0
        %908 = vmatprep.subr.bf16.mxu0 0
        %909 = vmatpush1.bf16.xpose.msra.mxu0 0
        %910 = vmatprep.subr.bf16.mxu0 0
        %911 = vmatpush1.bf16.xpose.msra.mxu0 0
        %912 = vmatprep.subr.bf16.mxu0 0
        %913 = vmatpush1.bf16.xpose.msra.mxu0 0
        %914 = vmatprep.subr.bf16.mxu0 0
        %915 = vmatpush1.bf16.xpose.msra.mxu0 0
        %916 = vmatprep.subr.bf16.mxu0 0
        %917 = vmatpush1.bf16.xpose.msra.mxu0 0
        %918 = vmatprep.subr.bf16.mxu0 0
        %919 = vmatpush1.bf16.xpose.msra.mxu0 0
        %920 = vmatprep.subr.bf16.mxu0 0
        %921 = vmatpush1.bf16.xpose.msra.mxu0 0
        %922 = vmatprep.subr.bf16.mxu0 0
        %923 = vmatpush1.bf16.xpose.msra.mxu0 0
        %924 = vmatprep.subr.bf16.mxu0 0
        %925 = vmatpush1.bf16.xpose.msra.mxu0 0
        %926 = vmatprep.subr.bf16.mxu0 0
        %927 = vmatpush1.bf16.xpose.msra.mxu0 0
        %928 = vmatprep.subr.bf16.mxu0 0
        %929 = vmatpush1.bf16.xpose.msra.mxu0 0
        %930 = vmatprep.mubr.bf16.mxu0 0
        %931 = vmatmul.mubr.bf16.gmra.mrb[0].mxu0 %v893
        %v932 = vpop.f32.mrb[0].mxu0
        %v933 = vadd.f32 0.0, %v932
        %v934 = vpop.f32.mrb[0].mxu0
        %v935 = vpop.f32.mrb[0].mxu0
        %v936 = vadd.f32 0.0, %v935
        %v937 = vpop.f32.mrb[0].mxu0
        %938 = vdwg.mxu0
        %v940 = vsel %vm891, %v761, 0
        %v943 = vsel %vm891, %v885, 0
        %945 = vmatprep.subr.bf16.mxu0 0
        %946 = vmatpush1.bf16.xpose.msra.mxu0 %v943
        %947 = vmatprep.subr.bf16.mxu0 0
        %948 = vmatpush1.bf16.xpose.msra.mxu0 0
        %949 = vmatprep.subr.bf16.mxu0 0
        %950 = vmatpush1.bf16.xpose.msra.mxu0 0
        %951 = vmatprep.subr.bf16.mxu0 0
        %952 = vmatpush1.bf16.xpose.msra.mxu0 0
        %953 = vmatprep.subr.bf16.mxu0 0
        %954 = vmatpush1.bf16.xpose.msra.mxu0 0
        %955 = vmatprep.subr.bf16.mxu0 0
        %956 = vmatpush1.bf16.xpose.msra.mxu0 0
        %957 = vmatprep.subr.bf16.mxu0 0
        %958 = vmatpush1.bf16.xpose.msra.mxu0 0
        %959 = vmatprep.subr.bf16.mxu0 0
        %960 = vmatpush1.bf16.xpose.msra.mxu0 0
        %961 = vmatprep.subr.bf16.mxu0 0
        %962 = vmatpush1.bf16.xpose.msra.mxu0 0
        %963 = vmatprep.subr.bf16.mxu0 0
        %964 = vmatpush1.bf16.xpose.msra.mxu0 0
        %965 = vmatprep.subr.bf16.mxu0 0
        %966 = vmatpush1.bf16.xpose.msra.mxu0 0
        %967 = vmatprep.subr.bf16.mxu0 0
        %968 = vmatpush1.bf16.xpose.msra.mxu0 0
        %969 = vmatprep.subr.bf16.mxu0 0
        %970 = vmatpush1.bf16.xpose.msra.mxu0 0
        %971 = vmatprep.subr.bf16.mxu0 0
        %972 = vmatpush1.bf16.xpose.msra.mxu0 0
        %973 = vmatprep.subr.bf16.mxu0 0
        %974 = vmatpush1.bf16.xpose.msra.mxu0 0
        %975 = vmatprep.subr.bf16.mxu0 0
        %976 = vmatpush1.bf16.xpose.msra.mxu0 0
        %977 = vmatprep.mubr.bf16.mxu0 0
        %978 = vmatmul.mubr.bf16.gmra.mrb[0].mxu0 %v940
        %v979 = vpop.f32.mrb[0].mxu0
        %v980 = vadd.f32 0.0, %v979
        %v981 = vpop.f32.mrb[0].mxu0
        %v982 = vpop.f32.mrb[0].mxu0
        %v983 = vadd.f32 0.0, %v982
        %v984 = vpop.f32.mrb[0].mxu0
        %985 = vdwg.mxu0
        %v986 = vsel %vm891, %v933, -inf
        %987 = vmax.xlane.f32.xlu0 %v986
        %v988 = vpop.xlane.xlu0 %987
        %v989 = vsel %vm891, %v936, -inf
        %990 = vmax.xlane.f32.xlu0 %v989
        %v991 = vpop.xlane.xlu0 %990
        %v992 = vsel %vm891, %v980, -inf
        %993 = vmax.xlane.f32.xlu0 %v992
        %v994 = vpop.xlane.xlu0 %993
        %v995 = vsel %vm891, %v983, -inf
        %996 = vmax.xlane.f32.xlu0 %v995
        %v997 = vpop.xlane.xlu0 %996
        %v998 = vsub.f32 %v933, %v988
        %v999 = vsub.f32 %v936, %v991
        %v1000 = vsub.f32 %v980, %v994
        %v1001 = vsub.f32 %v983, %v997
        %v1002 = vmul.f32 %v998, 1.442695
        %v1003 = vpow.pop %v1002
        %v1004 = vmul.f32 %v999, 1.442695
        %v1005 = vpow.pop %v1004
        %v1006 = vmul.f32 %v1000, 1.442695
        %v1007 = vpow.pop %v1006
        %v1008 = vmul.f32 %v1001, 1.442695
        %v1009 = vpow.pop %v1008
        %v1010 = vsel %vm891, %v1003, 0.0
        %1011 = vadd.xlane.f32.xlu0 %v1010
        %v1012 = vpop.xlane.xlu0 %1011
        %v1013 = vsel %vm891, %v1005, 0.0
        %1014 = vadd.xlane.f32.xlu0 %v1013
        %v1015 = vpop.xlane.xlu0 %1014
        %v1016 = vsel %vm891, %v1007, 0.0
        %1017 = vadd.xlane.f32.xlu0 %v1016
        %v1018 = vpop.xlane.xlu0 %1017
        %v1019 = vsel %vm891, %v1009, 0.0
        %1020 = vadd.xlane.f32.xlu0 %v1019
        %v1021 = vpop.xlane.xlu0 %1020
        %v1022 = vrcp.pop %v1012
        %v1023 = vrcp.pop %v1015
        %v1024 = vrcp.pop %v1018
        %v1025 = vrcp.pop %v1021
        %v1026 = vmul.f32 %v1003, %v1022
        %v1027 = vmul.f32 %v1005, %v1023
        %v1028 = vmul.f32 %v1007, %v1024
        %v1029 = vmul.f32 %v1009, %v1025
        %v1030 = vpack.c.bf16 %v1027, %v1026
        %v1031 = vpack.c.bf16 %v1029, %v1028
        %v1033 = vsel %vm891, %v1030, 0
        %vm1035 = vcmask 1043456
        %v1037 = vsel %vm1035, %v889, 0
        %1039 = vmatprep.subr.bf16.mxu0 0
        %1040 = vmatpush1.bf16.msra.mxu0 %v1037
        %1041 = vmatprep.subr.bf16.mxu0 0
        %1042 = vmatpush1.bf16.msra.mxu0 0
        %1043 = vmatprep.subr.bf16.mxu0 0
        %1044 = vmatpush1.bf16.msra.mxu0 0
        %1045 = vmatprep.subr.bf16.mxu0 0
        %1046 = vmatpush1.bf16.msra.mxu0 0
        %1047 = vmatprep.subr.bf16.mxu0 0
        %1048 = vmatpush1.bf16.msra.mxu0 0
        %1049 = vmatprep.subr.bf16.mxu0 0
        %1050 = vmatpush1.bf16.msra.mxu0 0
        %1051 = vmatprep.subr.bf16.mxu0 0
        %1052 = vmatpush1.bf16.msra.mxu0 0
        %1053 = vmatprep.subr.bf16.mxu0 0
        %1054 = vmatpush1.bf16.msra.mxu0 0
        %1055 = vmatprep.subr.bf16.mxu0 0
        %1056 = vmatpush1.bf16.msra.mxu0 0
        %1057 = vmatprep.subr.bf16.mxu0 0
        %1058 = vmatpush1.bf16.msra.mxu0 0
        %1059 = vmatprep.subr.bf16.mxu0 0
        %1060 = vmatpush1.bf16.msra.mxu0 0
        %1061 = vmatprep.subr.bf16.mxu0 0
        %1062 = vmatpush1.bf16.msra.mxu0 0
        %1063 = vmatprep.subr.bf16.mxu0 0
        %1064 = vmatpush1.bf16.msra.mxu0 0
        %1065 = vmatprep.subr.bf16.mxu0 0
        %1066 = vmatpush1.bf16.msra.mxu0 0
        %1067 = vmatprep.subr.bf16.mxu0 0
        %1068 = vmatpush1.bf16.msra.mxu0 0
        %1069 = vmatprep.subr.bf16.mxu0 0
        %1070 = vmatpush1.bf16.msra.mxu0 0
        %1071 = vmatprep.mubr.bf16.mxu0 0
        %1072 = vmatmul.mubr.bf16.gmra.mrb[0].mxu0 %v1033
        %v1073 = vpop.f32.mrb[0].mxu0
        %v1074 = vadd.f32 0.0, %v1073
        %v1075 = vpop.f32.mrb[0].mxu0
        %v1076 = vpop.f32.mrb[0].mxu0
        %v1077 = vadd.f32 0.0, %v1076
        %v1078 = vpop.f32.mrb[0].mxu0
        %1079 = vdwg.mxu0
        %v1081 = vsel %vm891, %v1031, 0
        %v1084 = vsel %vm1035, %v890, 0
        %1086 = vmatprep.subr.bf16.mxu0 0
        %1087 = vmatpush1.bf16.msra.mxu0 %v1084
        %1088 = vmatprep.subr.bf16.mxu0 0
        %1089 = vmatpush1.bf16.msra.mxu0 0
        %1090 = vmatprep.subr.bf16.mxu0 0
        %1091 = vmatpush1.bf16.msra.mxu0 0
        %1092 = vmatprep.subr.bf16.mxu0 0
        %1093 = vmatpush1.bf16.msra.mxu0 0
        %1094 = vmatprep.subr.bf16.mxu0 0
        %1095 = vmatpush1.bf16.msra.mxu0 0
        %1096 = vmatprep.subr.bf16.mxu0 0
        %1097 = vmatpush1.bf16.msra.mxu0 0
        %1098 = vmatprep.subr.bf16.mxu0 0
        %1099 = vmatpush1.bf16.msra.mxu0 0
        %1100 = vmatprep.subr.bf16.mxu0 0
        %1101 = vmatpush1.bf16.msra.mxu0 0
        %1102 = vmatprep.subr.bf16.mxu0 0
        %1103 = vmatpush1.bf16.msra.mxu0 0
        %1104 = vmatprep.subr.bf16.mxu0 0
        %1105 = vmatpush1.bf16.msra.mxu0 0
        %1106 = vmatprep.subr.bf16.mxu0 0
        %1107 = vmatpush1.bf16.msra.mxu0 0
        %1108 = vmatprep.subr.bf16.mxu0 0
        %1109 = vmatpush1.bf16.msra.mxu0 0
        %1110 = vmatprep.subr.bf16.mxu0 0
        %1111 = vmatpush1.bf16.msra.mxu0 0
        %1112 = vmatprep.subr.bf16.mxu0 0
        %1113 = vmatpush1.bf16.msra.mxu0 0
        %1114 = vmatprep.subr.bf16.mxu0 0
        %1115 = vmatpush1.bf16.msra.mxu0 0
        %1116 = vmatprep.subr.bf16.mxu0 0
        %1117 = vmatpush1.bf16.msra.mxu0 0
        %1118 = vmatprep.mubr.bf16.mxu0 0
        %1119 = vmatmul.mubr.bf16.gmra.mrb[0].mxu0 %v1081
        %v1120 = vpop.f32.mrb[0].mxu0
        %v1121 = vadd.f32 0.0, %v1120
        %v1122 = vpop.f32.mrb[0].mxu0
        %v1123 = vpop.f32.mrb[0].mxu0
        %v1124 = vadd.f32 0.0, %v1123
        %v1125 = vpop.f32.mrb[0].mxu0
        %1126 = vdwg.mxu0
        %v1127 = vpack.c.bf16 %v1077, %v1074
        %v1128 = vpack.c.bf16 %v1124, %v1121
        %1130 = vrot.lane.b32.xlu0 %v760, 120
        %v1131 = vpop.permute.xlu0 %1130
        %1132 = vrot.lane.b32.xlu0 %v884, 120
        %v1133 = vpop.permute.xlu0 %1132
        %v1135 = vsel %vm891, %v1131, 0
        %v1138 = vsel %vm891, %v1133, 0
        %1140 = vmatprep.subr.bf16.mxu0 0
        %1141 = vmatpush1.bf16.xpose.msra.mxu0 %v1138
        %1142 = vmatprep.subr.bf16.mxu0 0
        %1143 = vmatpush1.bf16.xpose.msra.mxu0 0
        %1144 = vmatprep.subr.bf16.mxu0 0
        %1145 = vmatpush1.bf16.xpose.msra.mxu0 0
        %1146 = vmatprep.subr.bf16.mxu0 0
        %1147 = vmatpush1.bf16.xpose.msra.mxu0 0
        %1148 = vmatprep.subr.bf16.mxu0 0
        %1149 = vmatpush1.bf16.xpose.msra.mxu0 0
        %1150 = vmatprep.subr.bf16.mxu0 0
        %1151 = vmatpush1.bf16.xpose.msra.mxu0 0
        %1152 = vmatprep.subr.bf16.mxu0 0
        %1153 = vmatpush1.bf16.xpose.msra.mxu0 0
        %1154 = vmatprep.subr.bf16.mxu0 0
        %1155 = vmatpush1.bf16.xpose.msra.mxu0 0
        %1156 = vmatprep.subr.bf16.mxu0 0
        %1157 = vmatpush1.bf16.xpose.msra.mxu0 0
        %1158 = vmatprep.subr.bf16.mxu0 0
        %1159 = vmatpush1.bf16.xpose.msra.mxu0 0
        %1160 = vmatprep.subr.bf16.mxu0 0
        %1161 = vmatpush1.bf16.xpose.msra.mxu0 0
        %1162 = vmatprep.subr.bf16.mxu0 0
        %1163 = vmatpush1.bf16.xpose.msra.mxu0 0
        %1164 = vmatprep.subr.bf16.mxu0 0
        %1165 = vmatpush1.bf16.xpose.msra.mxu0 0
        %1166 = vmatprep.subr.bf16.mxu0 0
        %1167 = vmatpush1.bf16.xpose.msra.mxu0 0
        %1168 = vmatprep.subr.bf16.mxu0 0
        %1169 = vmatpush1.bf16.xpose.msra.mxu0 0
        %1170 = vmatprep.subr.bf16.mxu0 0
        %1171 = vmatpush1.bf16.xpose.msra.mxu0 0
        %1172 = vmatprep.mubr.bf16.mxu0 0
        %1173 = vmatmul.mubr.bf16.gmra.mrb[0].mxu0 %v1135
        %v1174 = vpop.f32.mrb[0].mxu0
        %v1175 = vadd.f32 0.0, %v1174
        %v1176 = vpop.f32.mrb[0].mxu0
        %v1177 = vpop.f32.mrb[0].mxu0
        %v1178 = vadd.f32 0.0, %v1177
        %v1179 = vpop.f32.mrb[0].mxu0
        %1180 = vdwg.mxu0
        %1182 = vrot.lane.b32.xlu0 %v761, 120
        %v1183 = vpop.permute.xlu0 %1182
        %1184 = vrot.lane.b32.xlu0 %v885, 120
        %v1185 = vpop.permute.xlu0 %1184
        %v1187 = vsel %vm891, %v1183, 0
        %v1190 = vsel %vm891, %v1185, 0
        %1192 = vmatprep.subr.bf16.mxu0 0
        %1193 = vmatpush1.bf16.xpose.msra.mxu0 %v1190
        %1194 = vmatprep.subr.bf16.mxu0 0
        %1195 = vmatpush1.bf16.xpose.msra.mxu0 0
        %1196 = vmatprep.subr.bf16.mxu0 0
        %1197 = vmatpush1.bf16.xpose.msra.mxu0 0
        %1198 = vmatprep.subr.bf16.mxu0 0
        %1199 = vmatpush1.bf16.xpose.msra.mxu0 0
        %1200 = vmatprep.subr.bf16.mxu0 0
        %1201 = vmatpush1.bf16.xpose.msra.mxu0 0
        %1202 = vmatprep.subr.bf16.mxu0 0
        %1203 = vmatpush1.bf16.xpose.msra.mxu0 0
        %1204 = vmatprep.subr.bf16.mxu0 0
        %1205 = vmatpush1.bf16.xpose.msra.mxu0 0
        %1206 = vmatprep.subr.bf16.mxu0 0
        %1207 = vmatpush1.bf16.xpose.msra.mxu0 0
        %1208 = vmatprep.subr.bf16.mxu0 0
        %1209 = vmatpush1.bf16.xpose.msra.mxu0 0
        %1210 = vmatprep.subr.bf16.mxu0 0
        %1211 = vmatpush1.bf16.xpose.msra.mxu0 0
        %1212 = vmatprep.subr.bf16.mxu0 0
        %1213 = vmatpush1.bf16.xpose.msra.mxu0 0
        %1214 = vmatprep.subr.bf16.mxu0 0
        %1215 = vmatpush1.bf16.xpose.msra.mxu0 0
        %1216 = vmatprep.subr.bf16.mxu0 0
        %1217 = vmatpush1.bf16.xpose.msra.mxu0 0
        %1218 = vmatprep.subr.bf16.mxu0 0
        %1219 = vmatpush1.bf16.xpose.msra.mxu0 0
        %1220 = vmatprep.subr.bf16.mxu0 0
        %1221 = vmatpush1.bf16.xpose.msra.mxu0 0
        %1222 = vmatprep.subr.bf16.mxu0 0
        %1223 = vmatpush1.bf16.xpose.msra.mxu0 0
        %1224 = vmatprep.mubr.bf16.mxu0 0
        %1225 = vmatmul.mubr.bf16.gmra.mrb[0].mxu0 %v1187
        %v1226 = vpop.f32.mrb[0].mxu0
        %v1227 = vadd.f32 0.0, %v1226
        %v1228 = vpop.f32.mrb[0].mxu0
        %v1229 = vpop.f32.mrb[0].mxu0
        %v1230 = vadd.f32 0.0, %v1229
        %v1231 = vpop.f32.mrb[0].mxu0
        %1232 = vdwg.mxu0
        %v1233 = vsel %vm891, %v1175, -inf
        %1234 = vmax.xlane.f32.xlu0 %v1233
        %v1235 = vpop.xlane.xlu0 %1234
        %v1236 = vsel %vm891, %v1178, -inf
        %1237 = vmax.xlane.f32.xlu0 %v1236
        %v1238 = vpop.xlane.xlu0 %1237
        %v1239 = vsel %vm891, %v1227, -inf
        %1240 = vmax.xlane.f32.xlu0 %v1239
        %v1241 = vpop.xlane.xlu0 %1240
        %v1242 = vsel %vm891, %v1230, -inf
        %1243 = vmax.xlane.f32.xlu0 %v1242
        %v1244 = vpop.xlane.xlu0 %1243
        %v1245 = vsub.f32 %v1175, %v1235
        %v1246 = vsub.f32 %v1178, %v1238
        %v1247 = vsub.f32 %v1227, %v1241
        %v1248 = vsub.f32 %v1230, %v1244
        %v1249 = vmul.f32 %v1245, 1.442695
        %v1250 = vpow.pop %v1249
        %v1251 = vmul.f32 %v1246, 1.442695
        %v1252 = vpow.pop %v1251
        %v1253 = vmul.f32 %v1247, 1.442695
        %v1254 = vpow.pop %v1253
        %v1255 = vmul.f32 %v1248, 1.442695
        %v1256 = vpow.pop %v1255
        %v1257 = vsel %vm891, %v1250, 0.0
        %1258 = vadd.xlane.f32.xlu0 %v1257
        %v1259 = vpop.xlane.xlu0 %1258
        %v1260 = vsel %vm891, %v1252, 0.0
        %1261 = vadd.xlane.f32.xlu0 %v1260
        %v1262 = vpop.xlane.xlu0 %1261
        %v1263 = vsel %vm891, %v1254, 0.0
        %1264 = vadd.xlane.f32.xlu0 %v1263
        %v1265 = vpop.xlane.xlu0 %1264
        %v1266 = vsel %vm891, %v1256, 0.0
        %1267 = vadd.xlane.f32.xlu0 %v1266
        %v1268 = vpop.xlane.xlu0 %1267
        %v1269 = vrcp.pop %v1259
        %v1270 = vrcp.pop %v1262
        %v1271 = vrcp.pop %v1265
        %v1272 = vrcp.pop %v1268
        %v1273 = vmul.f32 %v1250, %v1269
        %v1274 = vmul.f32 %v1252, %v1270
        %v1275 = vmul.f32 %v1254, %v1271
        %v1276 = vmul.f32 %v1256, %v1272
        %v1277 = vpack.c.bf16 %v1274, %v1273
        %v1278 = vpack.c.bf16 %v1276, %v1275
        %1279 = vrot.lane.b32.xlu0 %v889, 120
        %v1280 = vpop.permute.xlu0 %1279
        %v1282 = vsel %vm891, %v1277, 0
        %v1285 = vsel %vm1035, %v1280, 0
        %1287 = vmatprep.subr.bf16.mxu0 0
        %1288 = vmatpush1.bf16.msra.mxu0 %v1285
        %1289 = vmatprep.subr.bf16.mxu0 0
        %1290 = vmatpush1.bf16.msra.mxu0 0
        %1291 = vmatprep.subr.bf16.mxu0 0
        %1292 = vmatpush1.bf16.msra.mxu0 0
        %1293 = vmatprep.subr.bf16.mxu0 0
        %1294 = vmatpush1.bf16.msra.mxu0 0
        %1295 = vmatprep.subr.bf16.mxu0 0
        %1296 = vmatpush1.bf16.msra.mxu0 0
        %1297 = vmatprep.subr.bf16.mxu0 0
        %1298 = vmatpush1.bf16.msra.mxu0 0
        %1299 = vmatprep.subr.bf16.mxu0 0
        %1300 = vmatpush1.bf16.msra.mxu0 0
        %1301 = vmatprep.subr.bf16.mxu0 0
        %1302 = vmatpush1.bf16.msra.mxu0 0
        %1303 = vmatprep.subr.bf16.mxu0 0
        %1304 = vmatpush1.bf16.msra.mxu0 0
        %1305 = vmatprep.subr.bf16.mxu0 0
        %1306 = vmatpush1.bf16.msra.mxu0 0
        %1307 = vmatprep.subr.bf16.mxu0 0
        %1308 = vmatpush1.bf16.msra.mxu0 0
        %1309 = vmatprep.subr.bf16.mxu0 0
        %1310 = vmatpush1.bf16.msra.mxu0 0
        %1311 = vmatprep.subr.bf16.mxu0 0
        %1312 = vmatpush1.bf16.msra.mxu0 0
        %1313 = vmatprep.subr.bf16.mxu0 0
        %1314 = vmatpush1.bf16.msra.mxu0 0
        %1315 = vmatprep.subr.bf16.mxu0 0
        %1316 = vmatpush1.bf16.msra.mxu0 0
        %1317 = vmatprep.subr.bf16.mxu0 0
        %1318 = vmatpush1.bf16.msra.mxu0 0
        %1319 = vmatprep.mubr.bf16.mxu0 0
        %1320 = vmatmul.mubr.bf16.gmra.mrb[0].mxu0 %v1282
        %v1321 = vpop.f32.mrb[0].mxu0
        %v1322 = vadd.f32 0.0, %v1321
        %v1323 = vpop.f32.mrb[0].mxu0
        %v1324 = vpop.f32.mrb[0].mxu0
        %v1325 = vadd.f32 0.0, %v1324
        %v1326 = vpop.f32.mrb[0].mxu0
        %1327 = vdwg.mxu0
        %1328 = vrot.lane.b32.xlu0 %v890, 120
        %v1329 = vpop.permute.xlu0 %1328
        %v1331 = vsel %vm891, %v1278, 0
        %v1334 = vsel %vm1035, %v1329, 0
        %1336 = vmatprep.subr.bf16.mxu0 0
        %1337 = vmatpush1.bf16.msra.mxu0 %v1334
        %1338 = vmatprep.subr.bf16.mxu0 0
        %1339 = vmatpush1.bf16.msra.mxu0 0
        %1340 = vmatprep.subr.bf16.mxu0 0
        %1341 = vmatpush1.bf16.msra.mxu0 0
        %1342 = vmatprep.subr.bf16.mxu0 0
        %1343 = vmatpush1.bf16.msra.mxu0 0
        %1344 = vmatprep.subr.bf16.mxu0 0
        %1345 = vmatpush1.bf16.msra.mxu0 0
        %1346 = vmatprep.subr.bf16.mxu0 0
        %1347 = vmatpush1.bf16.msra.mxu0 0
        %1348 = vmatprep.subr.bf16.mxu0 0
        %1349 = vmatpush1.bf16.msra.mxu0 0
        %1350 = vmatprep.subr.bf16.mxu0 0
        %1351 = vmatpush1.bf16.msra.mxu0 0
        %1352 = vmatprep.subr.bf16.mxu0 0
        %1353 = vmatpush1.bf16.msra.mxu0 0
        %1354 = vmatprep.subr.bf16.mxu0 0
        %1355 = vmatpush1.bf16.msra.mxu0 0
        %1356 = vmatprep.subr.bf16.mxu0 0
        %1357 = vmatpush1.bf16.msra.mxu0 0
        %1358 = vmatprep.subr.bf16.mxu0 0
        %1359 = vmatpush1.bf16.msra.mxu0 0
        %1360 = vmatprep.subr.bf16.mxu0 0
        %1361 = vmatpush1.bf16.msra.mxu0 0
        %1362 = vmatprep.subr.bf16.mxu0 0
        %1363 = vmatpush1.bf16.msra.mxu0 0
        %1364 = vmatprep.subr.bf16.mxu0 0
        %1365 = vmatpush1.bf16.msra.mxu0 0
        %1366 = vmatprep.subr.bf16.mxu0 0
        %1367 = vmatpush1.bf16.msra.mxu0 0
        %1368 = vmatprep.mubr.bf16.mxu0 0
        %1369 = vmatmul.mubr.bf16.gmra.mrb[0].mxu0 %v1331
        %v1370 = vpop.f32.mrb[0].mxu0
        %v1371 = vadd.f32 0.0, %v1370
        %v1372 = vpop.f32.mrb[0].mxu0
        %v1373 = vpop.f32.mrb[0].mxu0
        %v1374 = vadd.f32 0.0, %v1373
        %v1375 = vpop.f32.mrb[0].mxu0
        %1376 = vdwg.mxu0
        %v1377 = vpack.c.bf16 %v1325, %v1322
        %v1378 = vpack.c.bf16 %v1374, %v1371
        %1379 = vrot.lane.b32.xlu0 %v760, 112
        %v1380 = vpop.permute.xlu0 %1379
        %1381 = vrot.lane.b32.xlu0 %v884, 112
        %v1382 = vpop.permute.xlu0 %1381
        %v1384 = vsel %vm891, %v1380, 0
        %v1387 = vsel %vm891, %v1382, 0
        %1389 = vmatprep.subr.bf16.mxu0 0
        %1390 = vmatpush1.bf16.xpose.msra.mxu0 %v1387
        %1391 = vmatprep.subr.bf16.mxu0 0
        %1392 = vmatpush1.bf16.xpose.msra.mxu0 0
        %1393 = vmatprep.subr.bf16.mxu0 0
        %1394 = vmatpush1.bf16.xpose.msra.mxu0 0
        %1395 = vmatprep.subr.bf16.mxu0 0
        %1396 = vmatpush1.bf16.xpose.msra.mxu0 0
        %1397 = vmatprep.subr.bf16.mxu0 0
        %1398 = vmatpush1.bf16.xpose.msra.mxu0 0
        %1399 = vmatprep.subr.bf16.mxu0 0
        %1400 = vmatpush1.bf16.xpose.msra.mxu0 0
        %1401 = vmatprep.subr.bf16.mxu0 0
        %1402 = vmatpush1.bf16.xpose.msra.mxu0 0
        %1403 = vmatprep.subr.bf16.mxu0 0
        %1404 = vmatpush1.bf16.xpose.msra.mxu0 0
        %1405 = vmatprep.subr.bf16.mxu0 0
        %1406 = vmatpush1.bf16.xpose.msra.mxu0 0
        %1407 = vmatprep.subr.bf16.mxu0 0
        %1408 = vmatpush1.bf16.xpose.msra.mxu0 0
        %1409 = vmatprep.subr.bf16.mxu0 0
        %1410 = vmatpush1.bf16.xpose.msra.mxu0 0
        %1411 = vmatprep.subr.bf16.mxu0 0
        %1412 = vmatpush1.bf16.xpose.msra.mxu0 0
        %1413 = vmatprep.subr.bf16.mxu0 0
        %1414 = vmatpush1.bf16.xpose.msra.mxu0 0
        %1415 = vmatprep.subr.bf16.mxu0 0
        %1416 = vmatpush1.bf16.xpose.msra.mxu0 0
        %1417 = vmatprep.subr.bf16.mxu0 0
        %1418 = vmatpush1.bf16.xpose.msra.mxu0 0
        %1419 = vmatprep.subr.bf16.mxu0 0
        %1420 = vmatpush1.bf16.xpose.msra.mxu0 0
        %1421 = vmatprep.mubr.bf16.mxu0 0
        %1422 = vmatmul.mubr.bf16.gmra.mrb[0].mxu0 %v1384
        %v1423 = vpop.f32.mrb[0].mxu0
        %v1424 = vadd.f32 0.0, %v1423
        %v1425 = vpop.f32.mrb[0].mxu0
        %v1426 = vpop.f32.mrb[0].mxu0
        %v1427 = vadd.f32 0.0, %v1426
        %v1428 = vpop.f32.mrb[0].mxu0
        %1429 = vdwg.mxu0
        %1430 = vrot.lane.b32.xlu0 %v761, 112
        %v1431 = vpop.permute.xlu0 %1430
        %1432 = vrot.lane.b32.xlu0 %v885, 112
        %v1433 = vpop.permute.xlu0 %1432
        %v1435 = vsel %vm891, %v1431, 0
        %v1438 = vsel %vm891, %v1433, 0
        %1440 = vmatprep.subr.bf16.mxu0 0
        %1441 = vmatpush1.bf16.xpose.msra.mxu0 %v1438
        %1442 = vmatprep.subr.bf16.mxu0 0
        %1443 = vmatpush1.bf16.xpose.msra.mxu0 0
        %1444 = vmatprep.subr.bf16.mxu0 0
        %1445 = vmatpush1.bf16.xpose.msra.mxu0 0
        %1446 = vmatprep.subr.bf16.mxu0 0
        %1447 = vmatpush1.bf16.xpose.msra.mxu0 0
        %1448 = vmatprep.subr.bf16.mxu0 0
        %1449 = vmatpush1.bf16.xpose.msra.mxu0 0
        %1450 = vmatprep.subr.bf16.mxu0 0
        %1451 = vmatpush1.bf16.xpose.msra.mxu0 0
        %1452 = vmatprep.subr.bf16.mxu0 0
        %1453 = vmatpush1.bf16.xpose.msra.mxu0 0
        %1454 = vmatprep.subr.bf16.mxu0 0
        %1455 = vmatpush1.bf16.xpose.msra.mxu0 0
        %1456 = vmatprep.subr.bf16.mxu0 0
        %1457 = vmatpush1.bf16.xpose.msra.mxu0 0
        %1458 = vmatprep.subr.bf16.mxu0 0
        %1459 = vmatpush1.bf16.xpose.msra.mxu0 0
        %1460 = vmatprep.subr.bf16.mxu0 0
        %1461 = vmatpush1.bf16.xpose.msra.mxu0 0
        %1462 = vmatprep.subr.bf16.mxu0 0
        %1463 = vmatpush1.bf16.xpose.msra.mxu0 0
        %1464 = vmatprep.subr.bf16.mxu0 0
        %1465 = vmatpush1.bf16.xpose.msra.mxu0 0
        %1466 = vmatprep.subr.bf16.mxu0 0
        %1467 = vmatpush1.bf16.xpose.msra.mxu0 0
        %1468 = vmatprep.subr.bf16.mxu0 0
        %1469 = vmatpush1.bf16.xpose.msra.mxu0 0
        %1470 = vmatprep.subr.bf16.mxu0 0
        %1471 = vmatpush1.bf16.xpose.msra.mxu0 0
        %1472 = vmatprep.mubr.bf16.mxu0 0
        %1473 = vmatmul.mubr.bf16.gmra.mrb[0].mxu0 %v1435
        %v1474 = vpop.f32.mrb[0].mxu0
        %v1475 = vadd.f32 0.0, %v1474
        %v1476 = vpop.f32.mrb[0].mxu0
        %v1477 = vpop.f32.mrb[0].mxu0
        %v1478 = vadd.f32 0.0, %v1477
        %v1479 = vpop.f32.mrb[0].mxu0
        %1480 = vdwg.mxu0
        %v1481 = vsel %vm891, %v1424, -inf
        %1482 = vmax.xlane.f32.xlu0 %v1481
        %v1483 = vpop.xlane.xlu0 %1482
        %v1484 = vsel %vm891, %v1427, -inf
        %1485 = vmax.xlane.f32.xlu0 %v1484
        %v1486 = vpop.xlane.xlu0 %1485
        %v1487 = vsel %vm891, %v1475, -inf
        %1488 = vmax.xlane.f32.xlu0 %v1487
        %v1489 = vpop.xlane.xlu0 %1488
        %v1490 = vsel %vm891, %v1478, -inf
        %1491 = vmax.xlane.f32.xlu0 %v1490
        %v1492 = vpop.xlane.xlu0 %1491
        %v1493 = vsub.f32 %v1424, %v1483
        %v1494 = vsub.f32 %v1427, %v1486
        %v1495 = vsub.f32 %v1475, %v1489
        %v1496 = vsub.f32 %v1478, %v1492
        %v1497 = vmul.f32 %v1493, 1.442695
        %v1498 = vpow.pop %v1497
        %v1499 = vmul.f32 %v1494, 1.442695
        %v1500 = vpow.pop %v1499
        %v1501 = vmul.f32 %v1495, 1.442695
        %v1502 = vpow.pop %v1501
        %v1503 = vmul.f32 %v1496, 1.442695
        %v1504 = vpow.pop %v1503
        %v1505 = vsel %vm891, %v1498, 0.0
        %1506 = vadd.xlane.f32.xlu0 %v1505
        %v1507 = vpop.xlane.xlu0 %1506
        %v1508 = vsel %vm891, %v1500, 0.0
        %1509 = vadd.xlane.f32.xlu0 %v1508
        %v1510 = vpop.xlane.xlu0 %1509
        %v1511 = vsel %vm891, %v1502, 0.0
        %1512 = vadd.xlane.f32.xlu0 %v1511
        %v1513 = vpop.xlane.xlu0 %1512
        %v1514 = vsel %vm891, %v1504, 0.0
        %1515 = vadd.xlane.f32.xlu0 %v1514
        %v1516 = vpop.xlane.xlu0 %1515
        %v1517 = vrcp.pop %v1507
        %v1518 = vrcp.pop %v1510
        %v1519 = vrcp.pop %v1513
        %v1520 = vrcp.pop %v1516
        %v1521 = vmul.f32 %v1498, %v1517
        %v1522 = vmul.f32 %v1500, %v1518
        %v1523 = vmul.f32 %v1502, %v1519
        %v1524 = vmul.f32 %v1504, %v1520
        %v1525 = vpack.c.bf16 %v1522, %v1521
        %v1526 = vpack.c.bf16 %v1524, %v1523
        %1527 = vrot.lane.b32.xlu0 %v889, 112
        %v1528 = vpop.permute.xlu0 %1527
        %v1530 = vsel %vm891, %v1525, 0
        %v1533 = vsel %vm1035, %v1528, 0
        %1535 = vmatprep.subr.bf16.mxu0 0
        %1536 = vmatpush1.bf16.msra.mxu0 %v1533
        %1537 = vmatprep.subr.bf16.mxu0 0
        %1538 = vmatpush1.bf16.msra.mxu0 0
        %1539 = vmatprep.subr.bf16.mxu0 0
        %1540 = vmatpush1.bf16.msra.mxu0 0
        %1541 = vmatprep.subr.bf16.mxu0 0
        %1542 = vmatpush1.bf16.msra.mxu0 0
        %1543 = vmatprep.subr.bf16.mxu0 0
        %1544 = vmatpush1.bf16.msra.mxu0 0
        %1545 = vmatprep.subr.bf16.mxu0 0
        %1546 = vmatpush1.bf16.msra.mxu0 0
        %1547 = vmatprep.subr.bf16.mxu0 0
        %1548 = vmatpush1.bf16.msra.mxu0 0
        %1549 = vmatprep.subr.bf16.mxu0 0
        %1550 = vmatpush1.bf16.msra.mxu0 0
        %1551 = vmatprep.subr.bf16.mxu0 0
        %1552 = vmatpush1.bf16.msra.mxu0 0
        %1553 = vmatprep.subr.bf16.mxu0 0
        %1554 = vmatpush1.bf16.msra.mxu0 0
        %1555 = vmatprep.subr.bf16.mxu0 0
        %1556 = vmatpush1.bf16.msra.mxu0 0
        %1557 = vmatprep.subr.bf16.mxu0 0
        %1558 = vmatpush1.bf16.msra.mxu0 0
        %1559 = vmatprep.subr.bf16.mxu0 0
        %1560 = vmatpush1.bf16.msra.mxu0 0
        %1561 = vmatprep.subr.bf16.mxu0 0
        %1562 = vmatpush1.bf16.msra.mxu0 0
        %1563 = vmatprep.subr.bf16.mxu0 0
        %1564 = vmatpush1.bf16.msra.mxu0 0
        %1565 = vmatprep.subr.bf16.mxu0 0
        %1566 = vmatpush1.bf16.msra.mxu0 0
        %1567 = vmatprep.mubr.bf16.mxu0 0
        %1568 = vmatmul.mubr.bf16.gmra.mrb[0].mxu0 %v1530
        %v1569 = vpop.f32.mrb[0].mxu0
        %v1570 = vadd.f32 0.0, %v1569
        %v1571 = vpop.f32.mrb[0].mxu0
        %v1572 = vpop.f32.mrb[0].mxu0
        %v1573 = vadd.f32 0.0, %v1572
        %v1574 = vpop.f32.mrb[0].mxu0
        %1575 = vdwg.mxu0
        %1576 = vrot.lane.b32.xlu0 %v890, 112
        %v1577 = vpop.permute.xlu0 %1576
        %v1579 = vsel %vm891, %v1526, 0
        %v1582 = vsel %vm1035, %v1577, 0
        %1584 = vmatprep.subr.bf16.mxu0 0
        %1585 = vmatpush1.bf16.msra.mxu0 %v1582
        %1586 = vmatprep.subr.bf16.mxu0 0
        %1587 = vmatpush1.bf16.msra.mxu0 0
        %1588 = vmatprep.subr.bf16.mxu0 0
        %1589 = vmatpush1.bf16.msra.mxu0 0
        %1590 = vmatprep.subr.bf16.mxu0 0
        %1591 = vmatpush1.bf16.msra.mxu0 0
        %1592 = vmatprep.subr.bf16.mxu0 0
        %1593 = vmatpush1.bf16.msra.mxu0 0
        %1594 = vmatprep.subr.bf16.mxu0 0
        %1595 = vmatpush1.bf16.msra.mxu0 0
        %1596 = vmatprep.subr.bf16.mxu0 0
        %1597 = vmatpush1.bf16.msra.mxu0 0
        %1598 = vmatprep.subr.bf16.mxu0 0
        %1599 = vmatpush1.bf16.msra.mxu0 0
        %1600 = vmatprep.subr.bf16.mxu0 0
        %1601 = vmatpush1.bf16.msra.mxu0 0
        %1602 = vmatprep.subr.bf16.mxu0 0
        %1603 = vmatpush1.bf16.msra.mxu0 0
        %1604 = vmatprep.subr.bf16.mxu0 0
        %1605 = vmatpush1.bf16.msra.mxu0 0
        %1606 = vmatprep.subr.bf16.mxu0 0
        %1607 = vmatpush1.bf16.msra.mxu0 0
        %1608 = vmatprep.subr.bf16.mxu0 0
        %1609 = vmatpush1.bf16.msra.mxu0 0
        %1610 = vmatprep.subr.bf16.mxu0 0
        %1611 = vmatpush1.bf16.msra.mxu0 0
        %1612 = vmatprep.subr.bf16.mxu0 0
        %1613 = vmatpush1.bf16.msra.mxu0 0
        %1614 = vmatprep.subr.bf16.mxu0 0
        %1615 = vmatpush1.bf16.msra.mxu0 0
        %1616 = vmatprep.mubr.bf16.mxu0 0
        %1617 = vmatmul.mubr.bf16.gmra.mrb[0].mxu0 %v1579
        %v1618 = vpop.f32.mrb[0].mxu0
        %v1619 = vadd.f32 0.0, %v1618
        %v1620 = vpop.f32.mrb[0].mxu0
        %v1621 = vpop.f32.mrb[0].mxu0
        %v1622 = vadd.f32 0.0, %v1621
        %v1623 = vpop.f32.mrb[0].mxu0
        %1624 = vdwg.mxu0
        %v1625 = vpack.c.bf16 %v1573, %v1570
        %v1626 = vpack.c.bf16 %v1622, %v1619
        %1627 = vrot.lane.b32.xlu0 %v760, 104
        %v1628 = vpop.permute.xlu0 %1627
        %1629 = vrot.lane.b32.xlu0 %v884, 104
        %v1630 = vpop.permute.xlu0 %1629
        %v1632 = vsel %vm891, %v1628, 0
        %v1635 = vsel %vm891, %v1630, 0
        %1637 = vmatprep.subr.bf16.mxu0 0
        %1638 = vmatpush1.bf16.xpose.msra.mxu0 %v1635
        %1639 = vmatprep.subr.bf16.mxu0 0
        %1640 = vmatpush1.bf16.xpose.msra.mxu0 0
        %1641 = vmatprep.subr.bf16.mxu0 0
        %1642 = vmatpush1.bf16.xpose.msra.mxu0 0
        %1643 = vmatprep.subr.bf16.mxu0 0
        %1644 = vmatpush1.bf16.xpose.msra.mxu0 0
        %1645 = vmatprep.subr.bf16.mxu0 0
        %1646 = vmatpush1.bf16.xpose.msra.mxu0 0
        %1647 = vmatprep.subr.bf16.mxu0 0
        %1648 = vmatpush1.bf16.xpose.msra.mxu0 0
        %1649 = vmatprep.subr.bf16.mxu0 0
        %1650 = vmatpush1.bf16.xpose.msra.mxu0 0
        %1651 = vmatprep.subr.bf16.mxu0 0
        %1652 = vmatpush1.bf16.xpose.msra.mxu0 0
        %1653 = vmatprep.subr.bf16.mxu0 0
        %1654 = vmatpush1.bf16.xpose.msra.mxu0 0
        %1655 = vmatprep.subr.bf16.mxu0 0
        %1656 = vmatpush1.bf16.xpose.msra.mxu0 0
        %1657 = vmatprep.subr.bf16.mxu0 0
        %1658 = vmatpush1.bf16.xpose.msra.mxu0 0
        %1659 = vmatprep.subr.bf16.mxu0 0
        %1660 = vmatpush1.bf16.xpose.msra.mxu0 0
        %1661 = vmatprep.subr.bf16.mxu0 0
        %1662 = vmatpush1.bf16.xpose.msra.mxu0 0
        %1663 = vmatprep.subr.bf16.mxu0 0
        %1664 = vmatpush1.bf16.xpose.msra.mxu0 0
        %1665 = vmatprep.subr.bf16.mxu0 0
        %1666 = vmatpush1.bf16.xpose.msra.mxu0 0
        %1667 = vmatprep.subr.bf16.mxu0 0
        %1668 = vmatpush1.bf16.xpose.msra.mxu0 0
        %1669 = vmatprep.mubr.bf16.mxu0 0
        %1670 = vmatmul.mubr.bf16.gmra.mrb[0].mxu0 %v1632
        %v1671 = vpop.f32.mrb[0].mxu0
        %v1672 = vadd.f32 0.0, %v1671
        %v1673 = vpop.f32.mrb[0].mxu0
        %v1674 = vpop.f32.mrb[0].mxu0
        %v1675 = vadd.f32 0.0, %v1674
        %v1676 = vpop.f32.mrb[0].mxu0
        %1677 = vdwg.mxu0
        %1678 = vrot.lane.b32.xlu0 %v761, 104
        %v1679 = vpop.permute.xlu0 %1678
        %1680 = vrot.lane.b32.xlu0 %v885, 104
        %v1681 = vpop.permute.xlu0 %1680
        %v1683 = vsel %vm891, %v1679, 0
        %v1686 = vsel %vm891, %v1681, 0
        %1688 = vmatprep.subr.bf16.mxu0 0
        %1689 = vmatpush1.bf16.xpose.msra.mxu0 %v1686
        %1690 = vmatprep.subr.bf16.mxu0 0
        %1691 = vmatpush1.bf16.xpose.msra.mxu0 0
        %1692 = vmatprep.subr.bf16.mxu0 0
        %1693 = vmatpush1.bf16.xpose.msra.mxu0 0
        %1694 = vmatprep.subr.bf16.mxu0 0
        %1695 = vmatpush1.bf16.xpose.msra.mxu0 0
        %1696 = vmatprep.subr.bf16.mxu0 0
        %1697 = vmatpush1.bf16.xpose.msra.mxu0 0
        %1698 = vmatprep.subr.bf16.mxu0 0
        %1699 = vmatpush1.bf16.xpose.msra.mxu0 0
        %1700 = vmatprep.subr.bf16.mxu0 0
        %1701 = vmatpush1.bf16.xpose.msra.mxu0 0
        %1702 = vmatprep.subr.bf16.mxu0 0
        %1703 = vmatpush1.bf16.xpose.msra.mxu0 0
        %1704 = vmatprep.subr.bf16.mxu0 0
        %1705 = vmatpush1.bf16.xpose.msra.mxu0 0
        %1706 = vmatprep.subr.bf16.mxu0 0
        %1707 = vmatpush1.bf16.xpose.msra.mxu0 0
        %1708 = vmatprep.subr.bf16.mxu0 0
        %1709 = vmatpush1.bf16.xpose.msra.mxu0 0
        %1710 = vmatprep.subr.bf16.mxu0 0
        %1711 = vmatpush1.bf16.xpose.msra.mxu0 0
        %1712 = vmatprep.subr.bf16.mxu0 0
        %1713 = vmatpush1.bf16.xpose.msra.mxu0 0
        %1714 = vmatprep.subr.bf16.mxu0 0
        %1715 = vmatpush1.bf16.xpose.msra.mxu0 0
        %1716 = vmatprep.subr.bf16.mxu0 0
        %1717 = vmatpush1.bf16.xpose.msra.mxu0 0
        %1718 = vmatprep.subr.bf16.mxu0 0
        %1719 = vmatpush1.bf16.xpose.msra.mxu0 0
        %1720 = vmatprep.mubr.bf16.mxu0 0
        %1721 = vmatmul.mubr.bf16.gmra.mrb[0].mxu0 %v1683
        %v1722 = vpop.f32.mrb[0].mxu0
        %v1723 = vadd.f32 0.0, %v1722
        %v1724 = vpop.f32.mrb[0].mxu0
        %v1725 = vpop.f32.mrb[0].mxu0
        %v1726 = vadd.f32 0.0, %v1725
        %v1727 = vpop.f32.mrb[0].mxu0
        %1728 = vdwg.mxu0
        %v1729 = vsel %vm891, %v1672, -inf
        %1730 = vmax.xlane.f32.xlu0 %v1729
        %v1731 = vpop.xlane.xlu0 %1730
        %v1732 = vsel %vm891, %v1675, -inf
        %1733 = vmax.xlane.f32.xlu0 %v1732
        %v1734 = vpop.xlane.xlu0 %1733
        %v1735 = vsel %vm891, %v1723, -inf
        %1736 = vmax.xlane.f32.xlu0 %v1735
        %v1737 = vpop.xlane.xlu0 %1736
        %v1738 = vsel %vm891, %v1726, -inf
        %1739 = vmax.xlane.f32.xlu0 %v1738
        %v1740 = vpop.xlane.xlu0 %1739
        %v1741 = vsub.f32 %v1672, %v1731
        %v1742 = vsub.f32 %v1675, %v1734
        %v1743 = vsub.f32 %v1723, %v1737
        %v1744 = vsub.f32 %v1726, %v1740
        %v1745 = vmul.f32 %v1741, 1.442695
        %v1746 = vpow.pop %v1745
        %v1747 = vmul.f32 %v1742, 1.442695
        %v1748 = vpow.pop %v1747
        %v1749 = vmul.f32 %v1743, 1.442695
        %v1750 = vpow.pop %v1749
        %v1751 = vmul.f32 %v1744, 1.442695
        %v1752 = vpow.pop %v1751
        %v1753 = vsel %vm891, %v1746, 0.0
        %1754 = vadd.xlane.f32.xlu0 %v1753
        %v1755 = vpop.xlane.xlu0 %1754
        %v1756 = vsel %vm891, %v1748, 0.0
        %1757 = vadd.xlane.f32.xlu0 %v1756
        %v1758 = vpop.xlane.xlu0 %1757
        %v1759 = vsel %vm891, %v1750, 0.0
        %1760 = vadd.xlane.f32.xlu0 %v1759
        %v1761 = vpop.xlane.xlu0 %1760
        %v1762 = vsel %vm891, %v1752, 0.0
        %1763 = vadd.xlane.f32.xlu0 %v1762
        %v1764 = vpop.xlane.xlu0 %1763
        %v1765 = vrcp.pop %v1755
        %v1766 = vrcp.pop %v1758
        %v1767 = vrcp.pop %v1761
        %v1768 = vrcp.pop %v1764
        %v1769 = vmul.f32 %v1746, %v1765
        %v1770 = vmul.f32 %v1748, %v1766
        %v1771 = vmul.f32 %v1750, %v1767
        %v1772 = vmul.f32 %v1752, %v1768
        %v1773 = vpack.c.bf16 %v1770, %v1769
        %v1774 = vpack.c.bf16 %v1772, %v1771
        %1775 = vrot.lane.b32.xlu0 %v889, 104
        %v1776 = vpop.permute.xlu0 %1775
        %v1778 = vsel %vm891, %v1773, 0
        %v1781 = vsel %vm1035, %v1776, 0
        %1783 = vmatprep.subr.bf16.mxu0 0
        %1784 = vmatpush1.bf16.msra.mxu0 %v1781
        %1785 = vmatprep.subr.bf16.mxu0 0
        %1786 = vmatpush1.bf16.msra.mxu0 0
        %1787 = vmatprep.subr.bf16.mxu0 0
        %1788 = vmatpush1.bf16.msra.mxu0 0
        %1789 = vmatprep.subr.bf16.mxu0 0
        %1790 = vmatpush1.bf16.msra.mxu0 0
        %1791 = vmatprep.subr.bf16.mxu0 0
        %1792 = vmatpush1.bf16.msra.mxu0 0
        %1793 = vmatprep.subr.bf16.mxu0 0
        %1794 = vmatpush1.bf16.msra.mxu0 0
        %1795 = vmatprep.subr.bf16.mxu0 0
        %1796 = vmatpush1.bf16.msra.mxu0 0
        %1797 = vmatprep.subr.bf16.mxu0 0
        %1798 = vmatpush1.bf16.msra.mxu0 0
        %1799 = vmatprep.subr.bf16.mxu0 0
        %1800 = vmatpush1.bf16.msra.mxu0 0
        %1801 = vmatprep.subr.bf16.mxu0 0
        %1802 = vmatpush1.bf16.msra.mxu0 0
        %1803 = vmatprep.subr.bf16.mxu0 0
        %1804 = vmatpush1.bf16.msra.mxu0 0
        %1805 = vmatprep.subr.bf16.mxu0 0
        %1806 = vmatpush1.bf16.msra.mxu0 0
        %1807 = vmatprep.subr.bf16.mxu0 0
        %1808 = vmatpush1.bf16.msra.mxu0 0
        %1809 = vmatprep.subr.bf16.mxu0 0
        %1810 = vmatpush1.bf16.msra.mxu0 0
        %1811 = vmatprep.subr.bf16.mxu0 0
        %1812 = vmatpush1.bf16.msra.mxu0 0
        %1813 = vmatprep.subr.bf16.mxu0 0
        %1814 = vmatpush1.bf16.msra.mxu0 0
        %1815 = vmatprep.mubr.bf16.mxu0 0
        %1816 = vmatmul.mubr.bf16.gmra.mrb[0].mxu0 %v1778
        %v1817 = vpop.f32.mrb[0].mxu0
        %v1818 = vadd.f32 0.0, %v1817
        %v1819 = vpop.f32.mrb[0].mxu0
        %v1820 = vpop.f32.mrb[0].mxu0
        %v1821 = vadd.f32 0.0, %v1820
        %v1822 = vpop.f32.mrb[0].mxu0
        %1823 = vdwg.mxu0
        %1824 = vrot.lane.b32.xlu0 %v890, 104
        %v1825 = vpop.permute.xlu0 %1824
        %v1827 = vsel %vm891, %v1774, 0
        %v1830 = vsel %vm1035, %v1825, 0
        %1832 = vmatprep.subr.bf16.mxu0 0
        %1833 = vmatpush1.bf16.msra.mxu0 %v1830
        %1834 = vmatprep.subr.bf16.mxu0 0
        %1835 = vmatpush1.bf16.msra.mxu0 0
        %1836 = vmatprep.subr.bf16.mxu0 0
        %1837 = vmatpush1.bf16.msra.mxu0 0
        %1838 = vmatprep.subr.bf16.mxu0 0
        %1839 = vmatpush1.bf16.msra.mxu0 0
        %1840 = vmatprep.subr.bf16.mxu0 0
        %1841 = vmatpush1.bf16.msra.mxu0 0
        %1842 = vmatprep.subr.bf16.mxu0 0
        %1843 = vmatpush1.bf16.msra.mxu0 0
        %1844 = vmatprep.subr.bf16.mxu0 0
        %1845 = vmatpush1.bf16.msra.mxu0 0
        %1846 = vmatprep.subr.bf16.mxu0 0
        %1847 = vmatpush1.bf16.msra.mxu0 0
        %1848 = vmatprep.subr.bf16.mxu0 0
        %1849 = vmatpush1.bf16.msra.mxu0 0
        %1850 = vmatprep.subr.bf16.mxu0 0
        %1851 = vmatpush1.bf16.msra.mxu0 0
        %1852 = vmatprep.subr.bf16.mxu0 0
        %1853 = vmatpush1.bf16.msra.mxu0 0
        %1854 = vmatprep.subr.bf16.mxu0 0
        %1855 = vmatpush1.bf16.msra.mxu0 0
        %1856 = vmatprep.subr.bf16.mxu0 0
        %1857 = vmatpush1.bf16.msra.mxu0 0
        %1858 = vmatprep.subr.bf16.mxu0 0
        %1859 = vmatpush1.bf16.msra.mxu0 0
        %1860 = vmatprep.subr.bf16.mxu0 0
        %1861 = vmatpush1.bf16.msra.mxu0 0
        %1862 = vmatprep.subr.bf16.mxu0 0
        %1863 = vmatpush1.bf16.msra.mxu0 0
        %1864 = vmatprep.mubr.bf16.mxu0 0
        %1865 = vmatmul.mubr.bf16.gmra.mrb[0].mxu0 %v1827
        %v1866 = vpop.f32.mrb[0].mxu0
        %v1867 = vadd.f32 0.0, %v1866
        %v1868 = vpop.f32.mrb[0].mxu0
        %v1869 = vpop.f32.mrb[0].mxu0
        %v1870 = vadd.f32 0.0, %v1869
        %v1871 = vpop.f32.mrb[0].mxu0
        %1872 = vdwg.mxu0
        %v1873 = vpack.c.bf16 %v1821, %v1818
        %v1874 = vpack.c.bf16 %v1870, %v1867
        %1877 = vrot.lane.b32.xlu0 %v1377, 8
        %v1878 = vpop.permute.xlu0 %1877
        %1879 = vrot.lane.b32.xlu0 %v1378, 8
        %v1880 = vpop.permute.xlu0 %1879
        %1883 = vrot.lane.b32.xlu0 %v1625, 16
        %v1884 = vpop.permute.xlu0 %1883
        %1885 = vrot.lane.b32.xlu0 %v1626, 16
        %v1886 = vpop.permute.xlu0 %1885
        %1889 = vrot.lane.b32.xlu0 %v1873, 24
        %v1890 = vpop.permute.xlu0 %1889
        %1891 = vrot.lane.b32.xlu0 %v1874, 24
        %v1892 = vpop.permute.xlu0 %1891
        %v1895 = vsel %vm891, %v1127, %v1878
        %v1898 = vsel %vm891, %v1128, %v1880
        %vm1899 = vcmask 130048
        %v1901 = vsel %vm1899, %v1895, %v1884
        %v1903 = vsel %vm1899, %v1898, %v1886
        %vm1904 = vcmask 195584
        %v1906 = vsel %vm1904, %v1901, %v1890
        %v1908 = vsel %vm1904, %v1903, %v1892
        %v1909 = vld [vmem:[#allocation4] sm:$0xff]
        %v1910 = vld [vmem:[#allocation4 + $0x8] sm:$0xff]
        %v1911 = vld [vmem:[#allocation4 + $0x10] sm:$0xff]
        %v1912 = vld [vmem:[#allocation4 + $0x18] sm:$0xff]
        %v1913 = vld [vmem:[%s542] sm:$0xf]
        %v1914 = vld [vmem:[%s542 + $0x4] sm:$0xf]
        %v1915 = vld [vmem:[%s542 + $0x8] sm:$0xf]
        %v1916 = vld [vmem:[%s542 + $0xc] sm:$0xf]
        %v1921 = vunpack.c.l.b16 %v1913
        %v1922 = vunpack.c.l.b16 %v1914
        %v1923 = vunpack.c.l.b16 %v1915
        %v1924 = vunpack.c.l.b16 %v1916
        %v1925 = vpack.c.b16 %v1922, %v1921
        %v1926 = vpack.c.b16 %v1924, %v1923
        %v1929 = vsel %vm704, %v1906, 0
        %v1931 = vsel %vm704, %v1908, 0
        %1933 = vmatprep.subr.bf16.mxu0 0
        %1934 = vmatpush1.bf16.msra.mxu0 %v1925
        %1935 = vmatprep.subr.bf16.mxu0 0
        %1936 = vmatpush1.bf16.msra.mxu0 %v1926
        %1937 = vmatprep.subr.bf16.mxu0 0
        %1938 = vmatpush1.bf16.msra.mxu0 0
        %1939 = vmatprep.subr.bf16.mxu0 0
        %1940 = vmatpush1.bf16.msra.mxu0 0
        %1941 = vmatprep.subr.bf16.mxu0 0
        %1942 = vmatpush1.bf16.msra.mxu0 0
        %1943 = vmatprep.subr.bf16.mxu0 0
        %1944 = vmatpush1.bf16.msra.mxu0 0
        %1945 = vmatprep.subr.bf16.mxu0 0
        %1946 = vmatpush1.bf16.msra.mxu0 0
        %1947 = vmatprep.subr.bf16.mxu0 0
        %1948 = vmatpush1.bf16.msra.mxu0 0
        %1949 = vmatprep.subr.bf16.mxu0 0
        %1950 = vmatpush1.bf16.msra.mxu0 0
        %1951 = vmatprep.subr.bf16.mxu0 0
        %1952 = vmatpush1.bf16.msra.mxu0 0
        %1953 = vmatprep.subr.bf16.mxu0 0
        %1954 = vmatpush1.bf16.msra.mxu0 0
        %1955 = vmatprep.subr.bf16.mxu0 0
        %1956 = vmatpush1.bf16.msra.mxu0 0
        %1957 = vmatprep.subr.bf16.mxu0 0
        %1958 = vmatpush1.bf16.msra.mxu0 0
        %1959 = vmatprep.subr.bf16.mxu0 0
        %1960 = vmatpush1.bf16.msra.mxu0 0
        %1961 = vmatprep.subr.bf16.mxu0 0
        %1962 = vmatpush1.bf16.msra.mxu0 0
        %1963 = vmatprep.subr.bf16.mxu0 0
        %1964 = vmatpush1.bf16.msra.mxu0 0
        %1965 = vmatprep.mubr.bf16.mxu0 0
        %1966 = vmatmul.mubr.bf16.gmra.mrb[0].mxu0 %v1929
        %v1967 = vpop.f32.mrb[0].mxu0
        %v1968 = vadd.f32 0.0, %v1967
        %v1969 = vpop.f32.mrb[0].mxu0
        %v1970 = vpop.f32.mrb[0].mxu0
        %v1971 = vadd.f32 0.0, %v1970
        %v1972 = vpop.f32.mrb[0].mxu0
        %1973 = vmatprep.mubr.bf16.mxu0 0
        %1974 = vmatmul.mubr.bf16.gmra.mrb[0].mxu0 %v1931
        %v1975 = vpop.f32.mrb[0].mxu0
        %v1976 = vadd.f32 0.0, %v1975
        %v1977 = vpop.f32.mrb[0].mxu0
        %v1978 = vpop.f32.mrb[0].mxu0
        %v1979 = vadd.f32 0.0, %v1978
        %v1980 = vpop.f32.mrb[0].mxu0
        %1981 = vdwg.mxu0
        %v1982 = vadd.f32 %v1909, %v1968
        %v1983 = vadd.f32 %v1910, %v1971
        %v1984 = vadd.f32 %v1911, %v1976
        %v1985 = vadd.f32 %v1912, %v1979
        %1986 = vst.msk [vmem:[#allocation4] sm:$0xff] %vm704, %v1982
        %1987 = vst.msk [vmem:[#allocation4 + $0x8] sm:$0xff] %vm704, %v1983
        %1988 = vst.msk [vmem:[#allocation4 + $0x10] sm:$0xff] %vm704, %v1984
        %1989 = vst.msk [vmem:[#allocation4 + $0x18] sm:$0xff] %vm704, %v1985
        // Predicated region
        $region89: #{tpu_custom_call.1} parent=59 // pred_check
          %p1990 = pneg %p545
        $region90: #{tpu_custom_call.1} parent=59 // pred_check_branch
          %1992 = sbr.rel (%p1990) target = $region92
        $region91: #{tpu_custom_call.1} parent=59 // pred_region
          %v1993 = vld [vmem:[#allocation4] sm:$0xff]
          %v1994 = vld [vmem:[#allocation4 + $0x8] sm:$0xff]
          %v1995 = vld [vmem:[#allocation4 + $0x10] sm:$0xff]
          %v1996 = vld [vmem:[#allocation4 + $0x18] sm:$0xff]
          %1997 = vst.msk [vmem:[%s530] sm:$0xff] %vm704, %v1993
          %1998 = vst.msk [vmem:[%s530 + $0x8] sm:$0xff] %vm704, %v1994
          %1999 = vst.msk [vmem:[%s530 + $0x10] sm:$0xff] %vm704, %v1995
          %2000 = vst.msk [vmem:[%s530 + $0x18] sm:$0xff] %vm704, %v1996
        $region92: #{tpu_custom_call.1} parent=59 // pred_fallthru
          _
        %s2001 = sand.u32 %s292, 1
        %s2002 = scalar_lea.sflag [#allocation7], %s2001
        %s2003 = sand.u32 %s292, 1
        %s2004 = smul.addr %s2003, 32
        %s2005 = scalar_lea.vmem [#allocation16], %s2004
        // Predicated region
        $region93: #{tpu_custom_call.1} parent=59 // pred_check
          %p2006 = pneg %p302
        $region94: #{tpu_custom_call.1} parent=59 // pred_check_branch
          %2008 = sbr.rel (%p2006) target = $region96
        $region95: #{tpu_custom_call.1} parent=59 // pred_region
          %s2009 = smul.u32 2, %s36
          %s2011 = ssub.s32 512, 512
          %2012 = vsyncadd %s2002, %s2011
          %s2013 = smul.addr %s2009, 2
          %s2014 = smul.addr %s2013, 128
          %s2015 = scalar_lea.hbm %s10, %s2014
          %s2016 = sshll.u32 %s2005, 4
          %s2017 = int_to_ptr.vmem [resolvable:$true] %s2016
          %2022 = dma.vmem_to_hbm [thread:$0]  %s2017, 512, %s2015, %s2002, 128, 128, 8
        $region96: #{tpu_custom_call.1} parent=59 // pred_fallthru
          _
      $region60: #{tpu_custom_call.1} parent=5 // pred_fallthru
        _
      %p2023 = scmp.le.s32.totalorder 2, %s27
      // Predicated region
      $region97: #{tpu_custom_call.1} parent=5 // pred_check
        %p2024 = pneg %p2023
      $region98: #{tpu_custom_call.1} parent=5 // pred_check_branch
        %2026 = sbr.rel (%p2024) target = $region100
      $region99: #{tpu_custom_call.1} parent=5 // pred_region
        %s2027 = ssub.s32 %s27, 2
        // Predicated region
        $region101: #{tpu_custom_call.1} parent=99 // pred_check
          %p2028 = pneg %p308
        $region102: #{tpu_custom_call.1} parent=99 // pred_check_branch
          %2030 = sbr.rel (%p2028) target = $region104
        $region103: #{tpu_custom_call.1} parent=99 // pred_region
          %s2031 = sand.u32 %s293, 1
          %s2032 = scalar_lea.sflag [#allocation7], %s2031
          %s2033 = sand.u32 %s293, 1
          %s2034 = smul.addr %s2033, 32
          %s2035 = scalar_lea.vmem [#allocation16], %s2034
          %2036 = dma.done %s2032, 512
        $region104: #{tpu_custom_call.1} parent=99 // pred_fallthru
          _
      $region100: #{tpu_custom_call.1} parent=5 // pred_fallthru
        _
    $region6: #{tpu_custom_call.1} parent=1 // loop_footer
      %s31 = sadd.s32 1, %s27
    $region7: #{tpu_custom_call.1} parent=1 // loop_footer_branch
      %26 = sbr.rel target = $region3
    $region8: #{tpu_custom_call.1} parent=1 // loop_exit
      _
    %2037 = vsyncpa [#allocation6], 1
    %s2038 = scalar_lea.sflag [#allocation6], 1
    %2039 = vsyncpa %s2038, 1
    %2040 = vsyncpa [#allocation9], 1
    %s2041 = scalar_lea.sflag [#allocation9], 1
    %2042 = vsyncpa %s2041, 1
    %2043 = vsyncpa [#allocation12], 1
    %2044 = vsyncpa [#allocation15], 1
    %2045 = vsyncpa [#allocation7], 1
    %s2046 = scalar_lea.sflag [#allocation7], 1
    %2047 = vsyncpa %s2046, 1

</llo_original>
